<compile_context>
chip_gen: v6e
topology: v6e:2x2x1
jax: 0.10.0
libtpu: 0.0.40
codegen_flags: <defaults>
</compile_context>

<pallas_src>
import functools
import math

import jax
import jax.numpy as jnp
from jax.experimental import pallas as pl
from jax.experimental.pallas import tpu as pltpu


def encoder_kernel(x_ref, wq_ref, bq_ref, wk_ref, bk_ref, wv_ref, bv_ref,
                   wo_ref, bo_ref, ln1w_ref, ln1b_ref,
                   w1_ref, b1_ref, w2_ref, b2_ref, ln2w_ref, ln2b_ref,
                   out_ref, attn_ref=None, *, num_head):
    Bt, S, D = x_ref.shape
    H = num_head
    d_k = D // H
    inv_sqrt_dk = 1.0 / math.sqrt(d_k)
    cdt = wq_ref.dtype          # MXU operand dtype (bf16 weights passed from host)

    # ---- row-batched QKV projections: (Bt*S, D) @ (D, D) on the MXU, f32 accumulate ----
    x2 = x_ref[...].reshape(Bt * S, D)          # f32, kept for the residual path
    xc = x2.astype(cdt)
    q2 = jnp.dot(xc, wq_ref[...], preferred_element_type=jnp.float32) + bq_ref[0]
    k2 = jnp.dot(xc, wk_ref[...], preferred_element_type=jnp.float32) + bk_ref[0]
    v2 = jnp.dot(xc, wv_ref[...], preferred_element_type=jnp.float32) + bv_ref[0]

    q3 = (q2 * inv_sqrt_dk).reshape(Bt, S, D)   # fold 1/sqrt(d_k) into Q (f32)
    k3 = k2.reshape(Bt, S, D)
    v3 = v2.reshape(Bt, S, D)

    # ---- per-head scaled dot-product attention, merged back via the output projection ----
    # Instead of stacking heads / concatenating contexts along lanes (XLU shuffles + masked
    # stores at d_k=8), each head's context multiplies the matching sublane-aligned row
    # slice of W_O and accumulates into the projection result.
    wo = wo_ref[...]                            # (D, D) bf16, loaded once
    out_proj = jnp.zeros((Bt * S, D), jnp.float32)
    for h in range(H):
        lo, hi = h * d_k, (h + 1) * d_k
        q_h = q3[:, :, lo:hi].astype(cdt)       # (Bt, S, d_k)
        k_h = k3[:, :, lo:hi].astype(cdt)
        v_h = v3[:, :, lo:hi].astype(cdt)

        s_h = jnp.einsum('bqd,bkd->bqk', q_h, k_h,
                         preferred_element_type=jnp.float32)        # (Bt, S, S)
        m_h = jnp.max(s_h, axis=-1, keepdims=True)
        e_h = jnp.exp(s_h - m_h)
        denom = jnp.sum(e_h, axis=-1, keepdims=True)
        p_h = e_h * pl.reciprocal(denom, approx=False)              # softmax (EUP recip)

        if attn_ref is not None:
            attn_ref[:, h, :, :] = p_h                              # optional attention map

        ctx_h = jnp.einsum('bqk,bkd->bqd', p_h.astype(cdt), v_h,
                           preferred_element_type=jnp.float32)      # (Bt, S, d_k)
        out_proj = out_proj + jnp.dot(ctx_h.reshape(Bt * S, d_k).astype(cdt),
                                      wo[lo:hi, :],
                                      preferred_element_type=jnp.float32)
    out_proj = out_proj + bo_ref[0]

    # ---- residual + LayerNorm 1 (f32) ----
    y = out_proj + x2
    mu = jnp.mean(y, axis=-1, keepdims=True)
    var = jnp.mean((y - mu) * (y - mu), axis=-1, keepdims=True)
    y = (y - mu) * jax.lax.rsqrt(var + 1e-5) * ln1w_ref[0] + ln1b_ref[0]

    # ---- position-wise feed forward (bf16 operands, f32 accumulate) ----
    h1 = jnp.dot(y.astype(cdt), w1_ref[...], preferred_element_type=jnp.float32) + b1_ref[0]
    h1 = jnp.maximum(h1, 0.0)
    h2 = jnp.dot(h1.astype(cdt), w2_ref[...], preferred_element_type=jnp.float32) + b2_ref[0]

    # ---- residual + LayerNorm 2 (f32) ----
    z = h2 + y
    mu2 = jnp.mean(z, axis=-1, keepdims=True)
    var2 = jnp.mean((z - mu2) * (z - mu2), axis=-1, keepdims=True)
    z = (z - mu2) * jax.lax.rsqrt(var2 + 1e-5) * ln2w_ref[0] + ln2b_ref[0]
    out_ref[...] = z.reshape(Bt, S, D)


def _pick_batch_tile(B, S, D, H, hidden, act_budget_bytes=32 << 20):
    """Largest divisor of B whose per-step activations fit the VMEM budget, targeting
    Bt*S >= 512 matmul rows, but never more than B//2 so the 'parallel' grid keeps at
    least 2 steps for v7x's two TensorCores."""
    max_bt = max(1, B // 2)
    best = 1
    for bt in range(1, max_bt + 1):
        if B % bt:
            continue
        act = 4 * bt * (S * D * 12 + S * hidden * 2 + H * S * S * 3)
        if act > act_budget_bytes:
            break
        best = bt
        if bt * S >= 512:
            break
    return best


def _vmem_limit_bytes(Bt, S, D, H, hidden, return_attn):
    f32, bf16 = 4, 2
    weights = bf16 * (4 * D * D + 2 * D * hidden) + f32 * (8 * D + hidden)   # VMEM-resident
    io = f32 * Bt * (2 * S * D + (H * S * S if return_attn else 0))          # pipelined blocks
    acts = f32 * Bt * (S * D * 12 + S * hidden * 2 + H * S * S * 3)
    est = weights + 2 * io + acts + (4 << 20)            # + Mosaic internal-scratch headroom
    try:
        cap = int(pltpu.get_tpu_info().vmem_capacity_bytes) * 3 // 4   # ~48 MiB on v7x
    except Exception:
        cap = 44 << 20                                    # conservative for 64 MiB parts
    return int(min(max(est, 32 << 20), cap))


def encoder_forward(x, params, num_head, *, return_attn=False, batch_tile=None,
                    mxu_dtype=jnp.bfloat16):
    """x: (B, S, D) float32. Returns out (B,S,D) and, if return_attn, attn (B,H,S,S)."""
    B, S, D = x.shape
    H = num_head
    hidden = params["w1"].shape[1]
    Bt = batch_tile if batch_tile is not None else _pick_batch_tile(B, S, D, H, hidden)
    assert B % Bt == 0, "batch tile must divide batch"

    kernel = functools.partial(encoder_kernel, num_head=H)

    def wspec():
        # Grid-invariant operand: whole array resident in VMEM for the entire kernel
        # (single-buffered; no per-step re-DMA, no double-buffer copy).
        return pl.BlockSpec(memory_space=pltpu.MemorySpace.VMEM)

    in_specs = [pl.BlockSpec((Bt, S, D), lambda b: (b, 0, 0))] + [wspec() for _ in range(16)]
    out_specs = [pl.BlockSpec((Bt, S, D), lambda b: (b, 0, 0))]
    out_shape = [jax.ShapeDtypeStruct((B, S, D), jnp.float32)]
    if return_attn:
        out_specs.append(pl.BlockSpec((Bt, H, S, S), lambda b: (b, 0, 0, 0)))
        out_shape.append(jax.ShapeDtypeStruct((B, H, S, S), jnp.float32))

    def cast_w(w):
        return w.astype(mxu_dtype)

    results = pl.pallas_call(
        kernel,
        grid=(B // Bt,),
        in_specs=in_specs,
        out_specs=out_specs,
        out_shape=out_shape,
        compiler_params=pltpu.CompilerParams(
            dimension_semantics=("parallel",),
            vmem_limit_bytes=_vmem_limit_bytes(Bt, S, D, H, hidden, return_attn)),
    )(x,
      cast_w(params["wq"]), params["bq"], cast_w(params["wk"]), params["bk"],
      cast_w(params["wv"]), params["bv"], cast_w(params["wo"]), params["bo"],
      params["ln1_w"], params["ln1_b"],
      cast_w(params["w1"]), params["b1"], cast_w(params["w2"]), params["b2"],
      params["ln2_w"], params["ln2_b"])

    if return_attn:
        return results[0], results[1]
    return results[0]


def init_params(key, d_model, num_head, hidden):
    """Deterministic synthetic f32 master weights (shapes match the PyTorch __init__)."""
    ks = jax.random.split(key, 12)

    def lin(kw, kb, fan_in, fan_out):
        bound = 1.0 / math.sqrt(fan_in)
        w = jax.random.uniform(kw, (fan_in, fan_out), jnp.float32, -bound, bound)
        b = jax.random.uniform(kb, (1, fan_out), jnp.float32, -bound, bound)
        return w, b

    wq, bq = lin(ks[0], ks[1], d_model, d_model)
    wk, bk = lin(ks[2], ks[3], d_model, d_model)
    wv, bv = lin(ks[4], ks[5], d_model, d_model)
    wo, bo = lin(ks[6], ks[7], d_model, d_model)
    w1, b1 = lin(ks[8], ks[9], d_model, hidden)
    w2, b2 = lin(ks[10], ks[11], hidden, d_model)
    return dict(
        wq=wq, bq=bq, wk=wk, bk=bk, wv=wv, bv=bv, wo=wo, bo=bo,
        ln1_w=jnp.ones((1, d_model), jnp.float32), ln1_b=jnp.zeros((1, d_model), jnp.float32),
        w1=w1, b1=b1, w2=w2, b2=b2,
        ln2_w=jnp.ones((1, d_model), jnp.float32), ln2_b=jnp.zeros((1, d_model), jnp.float32),
    )


def encoder_reference(x, params, num_head):
    """Pure-JAX f32 reference mirroring the PyTorch forward (for validation)."""
    B, S, D = x.shape
    d_k = D // num_head
    Q = x @ params["wq"] + params["bq"][0]
    K = x @ params["wk"] + params["bk"][0]
    V = x @ params["wv"] + params["bv"][0]
    Q = Q.reshape(B, S, num_head, d_k).transpose(0, 2, 1, 3)
    K = K.reshape(B, S, num_head, d_k).transpose(0, 2, 1, 3)
    V = V.reshape(B, S, num_head, d_k).transpose(0, 2, 1, 3)
    scores = jnp.einsum("bhqd,bhkd->bhqk", Q, K) / math.sqrt(d_k)
    p = jax.nn.softmax(scores, axis=-1)
    ctx = jnp.einsum("bhqk,bhkd->bhqd", p, V).transpose(0, 2, 1, 3).reshape(B, S, D)
    out = ctx @ params["wo"] + params["bo"][0]
    y = out + x
    mu = y.mean(-1, keepdims=True)
    var = ((y - mu) ** 2).mean(-1, keepdims=True)
    y = (y - mu) * jax.lax.rsqrt(var + 1e-5) * params["ln1_w"][0] + params["ln1_b"][0]
    h1 = jnp.maximum(y @ params["w1"] + params["b1"][0], 0.0)
    h2 = h1 @ params["w2"] + params["b2"][0]
    z = h2 + y
    mu2 = z.mean(-1, keepdims=True)
    var2 = ((z - mu2) ** 2).mean(-1, keepdims=True)
    z = (z - mu2) * jax.lax.rsqrt(var2 + 1e-5) * params["ln2_w"][0] + params["ln2_b"][0]
    return z, p


if __name__ == "__main__":
    B, S, D, H, HIDDEN = 2, 8, 32, 4, 64
    key = jax.random.PRNGKey(0)
    kx, kp = jax.random.split(key)
    x = jax.random.normal(kx, (B, S, D), jnp.float32)
    params = init_params(kp, D, H, HIDDEN)
    # attn_mask is accepted by the PyTorch module but never actually applied to the
    # scores (see Scaled_Dot_Product_Attention), so it is intentionally ignored here.

    # Validation run: request the attention map too (matches the module's return tuple).
    out, attn = encoder_forward(x, params, H, return_attn=True)
    out = jax.block_until_ready(out)
    attn = jax.block_until_ready(attn)

    # Default (fast) path: no attention-map writeback.
    out_fast = jax.block_until_ready(encoder_forward(x, params, H))

    out_ref, attn_ref = encoder_reference(x, params, H)
    assert out.shape == (B, S, D) and attn.shape == (B, H, S, S)
    # bf16 MXU operands -> tolerance loosened vs. the f32 reference (per review guidance).
    TOL = 3e-2
    assert jnp.allclose(out, out_ref, atol=TOL, rtol=TOL), \
        float(jnp.max(jnp.abs(out - out_ref)))
    assert jnp.allclose(attn, attn_ref, atol=TOL, rtol=TOL), \
        float(jnp.max(jnp.abs(attn - attn_ref)))
    assert jnp.allclose(out_fast, out_ref, atol=TOL, rtol=TOL), \
        float(jnp.max(jnp.abs(out_fast - out_ref)))

    print("KERNEL_OK")
</pallas_src>

<mosaic_0001>
module attributes {stable_mosaic.version = 11 : i64} {
  func.func @encoder_kernel(%arg0: i32, %arg1: memref<1x8x32xf32, #tpu.memory_space<vmem>>, %arg2: memref<32x32xbf16, #tpu.memory_space<vmem>>, %arg3: memref<1x32xf32, #tpu.memory_space<vmem>>, %arg4: memref<32x32xbf16, #tpu.memory_space<vmem>>, %arg5: memref<1x32xf32, #tpu.memory_space<vmem>>, %arg6: memref<32x32xbf16, #tpu.memory_space<vmem>>, %arg7: memref<1x32xf32, #tpu.memory_space<vmem>>, %arg8: memref<32x32xbf16, #tpu.memory_space<vmem>>, %arg9: memref<1x32xf32, #tpu.memory_space<vmem>>, %arg10: memref<1x32xf32, #tpu.memory_space<vmem>>, %arg11: memref<1x32xf32, #tpu.memory_space<vmem>>, %arg12: memref<32x64xbf16, #tpu.memory_space<vmem>>, %arg13: memref<1x64xf32, #tpu.memory_space<vmem>>, %arg14: memref<64x32xbf16, #tpu.memory_space<vmem>>, %arg15: memref<1x32xf32, #tpu.memory_space<vmem>>, %arg16: memref<1x32xf32, #tpu.memory_space<vmem>>, %arg17: memref<1x32xf32, #tpu.memory_space<vmem>>, %arg18: memref<1x8x32xf32, #tpu.memory_space<vmem>>, %arg19: memref<1x4x8x8xf32, #tpu.memory_space<vmem>>) attributes {dimension_semantics = [#tpu.dimension_semantics<parallel>], iteration_bounds = array<i64: 2>, scalar_prefetch = 0 : i64, scratch_operands = 0 : i64, tpu.core_type = #tpu.core_type<tc>, window_params = [{transform_indices = @transform_0, window_bounds = array<i64: 1, 8, 32>}, {pipeline_mode = #tpu.pipeline_mode<synchronous>, transform_indices = @transform_1, window_bounds = array<i64: 32, 32>}, {pipeline_mode = #tpu.pipeline_mode<synchronous>, transform_indices = @transform_2, window_bounds = array<i64: 1, 32>}, {pipeline_mode = #tpu.pipeline_mode<synchronous>, transform_indices = @transform_3, window_bounds = array<i64: 32, 32>}, {pipeline_mode = #tpu.pipeline_mode<synchronous>, transform_indices = @transform_4, window_bounds = array<i64: 1, 32>}, {pipeline_mode = #tpu.pipeline_mode<synchronous>, transform_indices = @transform_5, window_bounds = array<i64: 32, 32>}, {pipeline_mode = #tpu.pipeline_mode<synchronous>, transform_indices = @transform_6, window_bounds = array<i64: 1, 32>}, {pipeline_mode = #tpu.pipeline_mode<synchronous>, transform_indices = @transform_7, window_bounds = array<i64: 32, 32>}, {pipeline_mode = #tpu.pipeline_mode<synchronous>, transform_indices = @transform_8, window_bounds = array<i64: 1, 32>}, {pipeline_mode = #tpu.pipeline_mode<synchronous>, transform_indices = @transform_9, window_bounds = array<i64: 1, 32>}, {pipeline_mode = #tpu.pipeline_mode<synchronous>, transform_indices = @transform_10, window_bounds = array<i64: 1, 32>}, {pipeline_mode = #tpu.pipeline_mode<synchronous>, transform_indices = @transform_11, window_bounds = array<i64: 32, 64>}, {pipeline_mode = #tpu.pipeline_mode<synchronous>, transform_indices = @transform_12, window_bounds = array<i64: 1, 64>}, {pipeline_mode = #tpu.pipeline_mode<synchronous>, transform_indices = @transform_13, window_bounds = array<i64: 64, 32>}, {pipeline_mode = #tpu.pipeline_mode<synchronous>, transform_indices = @transform_14, window_bounds = array<i64: 1, 32>}, {pipeline_mode = #tpu.pipeline_mode<synchronous>, transform_indices = @transform_15, window_bounds = array<i64: 1, 32>}, {pipeline_mode = #tpu.pipeline_mode<synchronous>, transform_indices = @transform_16, window_bounds = array<i64: 1, 32>}, {transform_indices = @transform_17, window_bounds = array<i64: 1, 8, 32>}, {transform_indices = @transform_18, window_bounds = array<i64: 1, 4, 8, 8>}]} {
    %c0 = arith.constant 0 : index
    %c0_0 = arith.constant 0 : index
    %c0_1 = arith.constant 0 : index
    %0 = vector.load %arg1[%c0, %c0_0, %c0_1] : memref<1x8x32xf32, #tpu.memory_space<vmem>>, vector<1x8x32xf32>
    %1 = vector.shape_cast %0 : vector<1x8x32xf32> to vector<8x32xf32>
    %2 = arith.truncf %1 : vector<8x32xf32> to vector<8x32xbf16>
    %c0_2 = arith.constant 0 : index
    %c0_3 = arith.constant 0 : index
    %3 = vector.load %arg2[%c0_2, %c0_3] : memref<32x32xbf16, #tpu.memory_space<vmem>>, vector<32x32xbf16>
    %cst = arith.constant dense<0.000000e+00> : vector<8x32xf32>
    %4 = tpu.matmul %2, %3, %cst {dimension_numbers = #tpu.dot_dimension_numbers<[1], [0], [0], [1], [0, 0, 1, 1], [], []>} : vector<8x32xbf16>, vector<32x32xbf16>, vector<8x32xf32> -> vector<8x32xf32>
    %c0_4 = arith.constant 0 : index
    %c0_5 = arith.constant 0 : index
    %5 = vector.load %arg3[%c0_4, %c0_5] : memref<1x32xf32, #tpu.memory_space<vmem>>, vector<1x32xf32>
    %6 = vector.shape_cast %5 : vector<1x32xf32> to vector<32xf32>
    %7 = vector.shape_cast %6 : vector<32xf32> to vector<1x32xf32>
    %8 = vector.broadcast %7 : vector<1x32xf32> to vector<8x32xf32>
    %9 = arith.addf %4, %8 : vector<8x32xf32>
    %c0_6 = arith.constant 0 : index
    %c0_7 = arith.constant 0 : index
    %10 = vector.load %arg4[%c0_6, %c0_7] : memref<32x32xbf16, #tpu.memory_space<vmem>>, vector<32x32xbf16>
    %cst_8 = arith.constant dense<0.000000e+00> : vector<8x32xf32>
    %11 = tpu.matmul %2, %10, %cst_8 {dimension_numbers = #tpu.dot_dimension_numbers<[1], [0], [0], [1], [0, 0, 1, 1], [], []>} : vector<8x32xbf16>, vector<32x32xbf16>, vector<8x32xf32> -> vector<8x32xf32>
    %c0_9 = arith.constant 0 : index
    %c0_10 = arith.constant 0 : index
    %12 = vector.load %arg5[%c0_9, %c0_10] : memref<1x32xf32, #tpu.memory_space<vmem>>, vector<1x32xf32>
    %13 = vector.shape_cast %12 : vector<1x32xf32> to vector<32xf32>
    %14 = vector.shape_cast %13 : vector<32xf32> to vector<1x32xf32>
    %15 = vector.broadcast %14 : vector<1x32xf32> to vector<8x32xf32>
    %16 = arith.addf %11, %15 : vector<8x32xf32>
    %c0_11 = arith.constant 0 : index
    %c0_12 = arith.constant 0 : index
    %17 = vector.load %arg6[%c0_11, %c0_12] : memref<32x32xbf16, #tpu.memory_space<vmem>>, vector<32x32xbf16>
    %cst_13 = arith.constant dense<0.000000e+00> : vector<8x32xf32>
    %18 = tpu.matmul %2, %17, %cst_13 {dimension_numbers = #tpu.dot_dimension_numbers<[1], [0], [0], [1], [0, 0, 1, 1], [], []>} : vector<8x32xbf16>, vector<32x32xbf16>, vector<8x32xf32> -> vector<8x32xf32>
    %c0_14 = arith.constant 0 : index
    %c0_15 = arith.constant 0 : index
    %19 = vector.load %arg7[%c0_14, %c0_15] : memref<1x32xf32, #tpu.memory_space<vmem>>, vector<1x32xf32>
    %20 = vector.shape_cast %19 : vector<1x32xf32> to vector<32xf32>
    %21 = vector.shape_cast %20 : vector<32xf32> to vector<1x32xf32>
    %22 = vector.broadcast %21 : vector<1x32xf32> to vector<8x32xf32>
    %23 = arith.addf %18, %22 : vector<8x32xf32>
    %cst_16 = arith.constant 0.353553385 : f32
    %24 = vector.broadcast %cst_16 : f32 to vector<8x32xf32>
    %25 = arith.mulf %9, %24 : vector<8x32xf32>
    %26 = vector.shape_cast %25 : vector<8x32xf32> to vector<1x8x32xf32>
    %27 = vector.shape_cast %16 : vector<8x32xf32> to vector<1x8x32xf32>
    %28 = vector.shape_cast %23 : vector<8x32xf32> to vector<1x8x32xf32>
    %c0_17 = arith.constant 0 : index
    %c0_18 = arith.constant 0 : index
    %29 = vector.load %arg8[%c0_17, %c0_18] : memref<32x32xbf16, #tpu.memory_space<vmem>>, vector<32x32xbf16>
    %cst_19 = arith.constant 0.000000e+00 : f32
    %30 = vector.broadcast %cst_19 : f32 to vector<8x32xf32>
    %31 = vector.extract_strided_slice %26 {offsets = [0, 0, 0], sizes = [1, 8, 8], strides = [1, 1, 1]} : vector<1x8x32xf32> to vector<1x8x8xf32>
    %32 = arith.truncf %31 : vector<1x8x8xf32> to vector<1x8x8xbf16>
    %33 = vector.extract_strided_slice %27 {offsets = [0, 0, 0], sizes = [1, 8, 8], strides = [1, 1, 1]} : vector<1x8x32xf32> to vector<1x8x8xf32>
    %34 = arith.truncf %33 : vector<1x8x8xf32> to vector<1x8x8xbf16>
    %35 = vector.extract_strided_slice %28 {offsets = [0, 0, 0], sizes = [1, 8, 8], strides = [1, 1, 1]} : vector<1x8x32xf32> to vector<1x8x8xf32>
    %36 = arith.truncf %35 : vector<1x8x8xf32> to vector<1x8x8xbf16>
    "tpu.trace_start"() <{level = 10 : i32, message = "bqd,bkd->bqk"}> : () -> ()
    %cst_20 = arith.constant dense<0.000000e+00> : vector<1x8x8xf32>
    %37 = tpu.matmul %32, %34, %cst_20 {dimension_numbers = #tpu.dot_dimension_numbers<[2], [2], [1], [1], [0, 0, 0, 1, 1, 1], [0], [0]>} : vector<1x8x8xbf16>, vector<1x8x8xbf16>, vector<1x8x8xf32> -> vector<1x8x8xf32>
    "tpu.trace_stop"() : () -> ()
    %cst_21 = arith.constant dense<0xFF800000> : vector<1x8xf32>
    %38 = vector.multi_reduction <maximumf>, %37, %cst_21 [2] : vector<1x8x8xf32> to vector<1x8xf32>
    %39 = vector.shape_cast %38 : vector<1x8xf32> to vector<1x8x1xf32>
    %40 = vector.broadcast %39 : vector<1x8x1xf32> to vector<1x8x8xf32>
    %41 = arith.subf %37, %40 : vector<1x8x8xf32>
    %42 = math.exp %41 : vector<1x8x8xf32>
    %cst_22 = arith.constant dense<0.000000e+00> : vector<1x8xf32>
    %43 = vector.multi_reduction <add>, %42, %cst_22 [2] : vector<1x8x8xf32> to vector<1x8xf32>
    %44 = vector.shape_cast %43 : vector<1x8xf32> to vector<1x8x1xf32>
    %45 = tpu.reciprocal %44 : vector<1x8x1xf32> -> vector<1x8x1xf32>
    %46 = vector.broadcast %45 : vector<1x8x1xf32> to vector<1x8x8xf32>
    %47 = arith.mulf %42, %46 : vector<1x8x8xf32>
    %c0_23 = arith.constant 0 : index
    %c0_24 = arith.constant 0 : index
    %c0_25 = arith.constant 0 : index
    %c0_26 = arith.constant 0 : index
    %48 = vector.load %arg19[%c0_23, %c0_24, %c0_25, %c0_26] : memref<1x4x8x8xf32, #tpu.memory_space<vmem>>, vector<1x1x8x8xf32>
    %49 = vector.shape_cast %48 : vector<1x1x8x8xf32> to vector<1x8x8xf32>
    %50 = vector.shape_cast %47 : vector<1x8x8xf32> to vector<1x1x8x8xf32>
    tpu.vector_store %arg19[%c0_23, %c0_24, %c0_25, %c0_26], %50 {strides = array<i32>} : memref<1x4x8x8xf32, #tpu.memory_space<vmem>>, vector<1x1x8x8xf32>,
    %51 = arith.truncf %47 : vector<1x8x8xf32> to vector<1x8x8xbf16>
    "tpu.trace_start"() <{level = 10 : i32, message = "bqk,bkd->bqd"}> : () -> ()
    %cst_27 = arith.constant dense<0.000000e+00> : vector<1x8x8xf32>
    %52 = tpu.matmul %51, %36, %cst_27 {dimension_numbers = #tpu.dot_dimension_numbers<[2], [1], [1], [2], [0, 0, 0, 1, 1, 2], [0], [0]>} : vector<1x8x8xbf16>, vector<1x8x8xbf16>, vector<1x8x8xf32> -> vector<1x8x8xf32>
    "tpu.trace_stop"() : () -> ()
    %53 = vector.shape_cast %52 : vector<1x8x8xf32> to vector<8x8xf32>
    %54 = arith.truncf %53 : vector<8x8xf32> to vector<8x8xbf16>
    %55 = vector.extract_strided_slice %29 {offsets = [0, 0], sizes = [8, 32], strides = [1, 1]} : vector<32x32xbf16> to vector<8x32xbf16>
    %cst_28 = arith.constant dense<0.000000e+00> : vector<8x32xf32>
    %56 = tpu.matmul %54, %55, %cst_28 {dimension_numbers = #tpu.dot_dimension_numbers<[1], [0], [0], [1], [0, 0, 1, 1], [], []>} : vector<8x8xbf16>, vector<8x32xbf16>, vector<8x32xf32> -> vector<8x32xf32>
    %57 = arith.addf %30, %56 : vector<8x32xf32>
    %58 = vector.extract_strided_slice %26 {offsets = [0, 0, 8], sizes = [1, 8, 8], strides = [1, 1, 1]} : vector<1x8x32xf32> to vector<1x8x8xf32>
    %59 = arith.truncf %58 : vector<1x8x8xf32> to vector<1x8x8xbf16>
    %60 = vector.extract_strided_slice %27 {offsets = [0, 0, 8], sizes = [1, 8, 8], strides = [1, 1, 1]} : vector<1x8x32xf32> to vector<1x8x8xf32>
    %61 = arith.truncf %60 : vector<1x8x8xf32> to vector<1x8x8xbf16>
    %62 = vector.extract_strided_slice %28 {offsets = [0, 0, 8], sizes = [1, 8, 8], strides = [1, 1, 1]} : vector<1x8x32xf32> to vector<1x8x8xf32>
    %63 = arith.truncf %62 : vector<1x8x8xf32> to vector<1x8x8xbf16>
    "tpu.trace_start"() <{level = 10 : i32, message = "bqd,bkd->bqk"}> : () -> ()
    %cst_29 = arith.constant dense<0.000000e+00> : vector<1x8x8xf32>
    %64 = tpu.matmul %59, %61, %cst_29 {dimension_numbers = #tpu.dot_dimension_numbers<[2], [2], [1], [1], [0, 0, 0, 1, 1, 1], [0], [0]>} : vector<1x8x8xbf16>, vector<1x8x8xbf16>, vector<1x8x8xf32> -> vector<1x8x8xf32>
    "tpu.trace_stop"() : () -> ()
    %cst_30 = arith.constant dense<0xFF800000> : vector<1x8xf32>
    %65 = vector.multi_reduction <maximumf>, %64, %cst_30 [2] : vector<1x8x8xf32> to vector<1x8xf32>
    %66 = vector.shape_cast %65 : vector<1x8xf32> to vector<1x8x1xf32>
    %67 = vector.broadcast %66 : vector<1x8x1xf32> to vector<1x8x8xf32>
    %68 = arith.subf %64, %67 : vector<1x8x8xf32>
    %69 = math.exp %68 : vector<1x8x8xf32>
    %cst_31 = arith.constant dense<0.000000e+00> : vector<1x8xf32>
    %70 = vector.multi_reduction <add>, %69, %cst_31 [2] : vector<1x8x8xf32> to vector<1x8xf32>
    %71 = vector.shape_cast %70 : vector<1x8xf32> to vector<1x8x1xf32>
    %72 = tpu.reciprocal %71 : vector<1x8x1xf32> -> vector<1x8x1xf32>
    %73 = vector.broadcast %72 : vector<1x8x1xf32> to vector<1x8x8xf32>
    %74 = arith.mulf %69, %73 : vector<1x8x8xf32>
    %c0_32 = arith.constant 0 : index
    %c1 = arith.constant 1 : index
    %c0_33 = arith.constant 0 : index
    %c0_34 = arith.constant 0 : index
    %75 = vector.load %arg19[%c0_32, %c1, %c0_33, %c0_34] : memref<1x4x8x8xf32, #tpu.memory_space<vmem>>, vector<1x1x8x8xf32>
    %76 = vector.shape_cast %75 : vector<1x1x8x8xf32> to vector<1x8x8xf32>
    %77 = vector.shape_cast %74 : vector<1x8x8xf32> to vector<1x1x8x8xf32>
    tpu.vector_store %arg19[%c0_32, %c1, %c0_33, %c0_34], %77 {strides = array<i32>} : memref<1x4x8x8xf32, #tpu.memory_space<vmem>>, vector<1x1x8x8xf32>,
    %78 = arith.truncf %74 : vector<1x8x8xf32> to vector<1x8x8xbf16>
    "tpu.trace_start"() <{level = 10 : i32, message = "bqk,bkd->bqd"}> : () -> ()
    %cst_35 = arith.constant dense<0.000000e+00> : vector<1x8x8xf32>
    %79 = tpu.matmul %78, %63, %cst_35 {dimension_numbers = #tpu.dot_dimension_numbers<[2], [1], [1], [2], [0, 0, 0, 1, 1, 2], [0], [0]>} : vector<1x8x8xbf16>, vector<1x8x8xbf16>, vector<1x8x8xf32> -> vector<1x8x8xf32>
    "tpu.trace_stop"() : () -> ()
    %80 = vector.shape_cast %79 : vector<1x8x8xf32> to vector<8x8xf32>
    %81 = arith.truncf %80 : vector<8x8xf32> to vector<8x8xbf16>
    %82 = vector.extract_strided_slice %29 {offsets = [8, 0], sizes = [8, 32], strides = [1, 1]} : vector<32x32xbf16> to vector<8x32xbf16>
    %cst_36 = arith.constant dense<0.000000e+00> : vector<8x32xf32>
    %83 = tpu.matmul %81, %82, %cst_36 {dimension_numbers = #tpu.dot_dimension_numbers<[1], [0], [0], [1], [0, 0, 1, 1], [], []>} : vector<8x8xbf16>, vector<8x32xbf16>, vector<8x32xf32> -> vector<8x32xf32>
    %84 = arith.addf %57, %83 : vector<8x32xf32>
    %85 = vector.extract_strided_slice %26 {offsets = [0, 0, 16], sizes = [1, 8, 8], strides = [1, 1, 1]} : vector<1x8x32xf32> to vector<1x8x8xf32>
    %86 = arith.truncf %85 : vector<1x8x8xf32> to vector<1x8x8xbf16>
    %87 = vector.extract_strided_slice %27 {offsets = [0, 0, 16], sizes = [1, 8, 8], strides = [1, 1, 1]} : vector<1x8x32xf32> to vector<1x8x8xf32>
    %88 = arith.truncf %87 : vector<1x8x8xf32> to vector<1x8x8xbf16>
    %89 = vector.extract_strided_slice %28 {offsets = [0, 0, 16], sizes = [1, 8, 8], strides = [1, 1, 1]} : vector<1x8x32xf32> to vector<1x8x8xf32>
    %90 = arith.truncf %89 : vector<1x8x8xf32> to vector<1x8x8xbf16>
    "tpu.trace_start"() <{level = 10 : i32, message = "bqd,bkd->bqk"}> : () -> ()
    %cst_37 = arith.constant dense<0.000000e+00> : vector<1x8x8xf32>
    %91 = tpu.matmul %86, %88, %cst_37 {dimension_numbers = #tpu.dot_dimension_numbers<[2], [2], [1], [1], [0, 0, 0, 1, 1, 1], [0], [0]>} : vector<1x8x8xbf16>, vector<1x8x8xbf16>, vector<1x8x8xf32> -> vector<1x8x8xf32>
    "tpu.trace_stop"() : () -> ()
    %cst_38 = arith.constant dense<0xFF800000> : vector<1x8xf32>
    %92 = vector.multi_reduction <maximumf>, %91, %cst_38 [2] : vector<1x8x8xf32> to vector<1x8xf32>
    %93 = vector.shape_cast %92 : vector<1x8xf32> to vector<1x8x1xf32>
    %94 = vector.broadcast %93 : vector<1x8x1xf32> to vector<1x8x8xf32>
    %95 = arith.subf %91, %94 : vector<1x8x8xf32>
    %96 = math.exp %95 : vector<1x8x8xf32>
    %cst_39 = arith.constant dense<0.000000e+00> : vector<1x8xf32>
    %97 = vector.multi_reduction <add>, %96, %cst_39 [2] : vector<1x8x8xf32> to vector<1x8xf32>
    %98 = vector.shape_cast %97 : vector<1x8xf32> to vector<1x8x1xf32>
    %99 = tpu.reciprocal %98 : vector<1x8x1xf32> -> vector<1x8x1xf32>
    %100 = vector.broadcast %99 : vector<1x8x1xf32> to vector<1x8x8xf32>
    %101 = arith.mulf %96, %100 : vector<1x8x8xf32>
    %c0_40 = arith.constant 0 : index
    %c2 = arith.constant 2 : index
    %c0_41 = arith.constant 0 : index
    %c0_42 = arith.constant 0 : index
    %102 = vector.load %arg19[%c0_40, %c2, %c0_41, %c0_42] : memref<1x4x8x8xf32, #tpu.memory_space<vmem>>, vector<1x1x8x8xf32>
    %103 = vector.shape_cast %102 : vector<1x1x8x8xf32> to vector<1x8x8xf32>
    %104 = vector.shape_cast %101 : vector<1x8x8xf32> to vector<1x1x8x8xf32>
    tpu.vector_store %arg19[%c0_40, %c2, %c0_41, %c0_42], %104 {strides = array<i32>} : memref<1x4x8x8xf32, #tpu.memory_space<vmem>>, vector<1x1x8x8xf32>,
    %105 = arith.truncf %101 : vector<1x8x8xf32> to vector<1x8x8xbf16>
    "tpu.trace_start"() <{level = 10 : i32, message = "bqk,bkd->bqd"}> : () -> ()
    %cst_43 = arith.constant dense<0.000000e+00> : vector<1x8x8xf32>
    %106 = tpu.matmul %105, %90, %cst_43 {dimension_numbers = #tpu.dot_dimension_numbers<[2], [1], [1], [2], [0, 0, 0, 1, 1, 2], [0], [0]>} : vector<1x8x8xbf16>, vector<1x8x8xbf16>, vector<1x8x8xf32> -> vector<1x8x8xf32>
    "tpu.trace_stop"() : () -> ()
    %107 = vector.shape_cast %106 : vector<1x8x8xf32> to vector<8x8xf32>
    %108 = arith.truncf %107 : vector<8x8xf32> to vector<8x8xbf16>
    %109 = vector.extract_strided_slice %29 {offsets = [16, 0], sizes = [8, 32], strides = [1, 1]} : vector<32x32xbf16> to vector<8x32xbf16>
    %cst_44 = arith.constant dense<0.000000e+00> : vector<8x32xf32>
    %110 = tpu.matmul %108, %109, %cst_44 {dimension_numbers = #tpu.dot_dimension_numbers<[1], [0], [0], [1], [0, 0, 1, 1], [], []>} : vector<8x8xbf16>, vector<8x32xbf16>, vector<8x32xf32> -> vector<8x32xf32>
    %111 = arith.addf %84, %110 : vector<8x32xf32>
    %112 = vector.extract_strided_slice %26 {offsets = [0, 0, 24], sizes = [1, 8, 8], strides = [1, 1, 1]} : vector<1x8x32xf32> to vector<1x8x8xf32>
    %113 = arith.truncf %112 : vector<1x8x8xf32> to vector<1x8x8xbf16>
    %114 = vector.extract_strided_slice %27 {offsets = [0, 0, 24], sizes = [1, 8, 8], strides = [1, 1, 1]} : vector<1x8x32xf32> to vector<1x8x8xf32>
    %115 = arith.truncf %114 : vector<1x8x8xf32> to vector<1x8x8xbf16>
    %116 = vector.extract_strided_slice %28 {offsets = [0, 0, 24], sizes = [1, 8, 8], strides = [1, 1, 1]} : vector<1x8x32xf32> to vector<1x8x8xf32>
    %117 = arith.truncf %116 : vector<1x8x8xf32> to vector<1x8x8xbf16>
    "tpu.trace_start"() <{level = 10 : i32, message = "bqd,bkd->bqk"}> : () -> ()
    %cst_45 = arith.constant dense<0.000000e+00> : vector<1x8x8xf32>
    %118 = tpu.matmul %113, %115, %cst_45 {dimension_numbers = #tpu.dot_dimension_numbers<[2], [2], [1], [1], [0, 0, 0, 1, 1, 1], [0], [0]>} : vector<1x8x8xbf16>, vector<1x8x8xbf16>, vector<1x8x8xf32> -> vector<1x8x8xf32>
    "tpu.trace_stop"() : () -> ()
    %cst_46 = arith.constant dense<0xFF800000> : vector<1x8xf32>
    %119 = vector.multi_reduction <maximumf>, %118, %cst_46 [2] : vector<1x8x8xf32> to vector<1x8xf32>
    %120 = vector.shape_cast %119 : vector<1x8xf32> to vector<1x8x1xf32>
    %121 = vector.broadcast %120 : vector<1x8x1xf32> to vector<1x8x8xf32>
    %122 = arith.subf %118, %121 : vector<1x8x8xf32>
    %123 = math.exp %122 : vector<1x8x8xf32>
    %cst_47 = arith.constant dense<0.000000e+00> : vector<1x8xf32>
    %124 = vector.multi_reduction <add>, %123, %cst_47 [2] : vector<1x8x8xf32> to vector<1x8xf32>
    %125 = vector.shape_cast %124 : vector<1x8xf32> to vector<1x8x1xf32>
    %126 = tpu.reciprocal %125 : vector<1x8x1xf32> -> vector<1x8x1xf32>
    %127 = vector.broadcast %126 : vector<1x8x1xf32> to vector<1x8x8xf32>
    %128 = arith.mulf %123, %127 : vector<1x8x8xf32>
    %c0_48 = arith.constant 0 : index
    %c3 = arith.constant 3 : index
    %c0_49 = arith.constant 0 : index
    %c0_50 = arith.constant 0 : index
    %129 = vector.load %arg19[%c0_48, %c3, %c0_49, %c0_50] : memref<1x4x8x8xf32, #tpu.memory_space<vmem>>, vector<1x1x8x8xf32>
    %130 = vector.shape_cast %129 : vector<1x1x8x8xf32> to vector<1x8x8xf32>
    %131 = vector.shape_cast %128 : vector<1x8x8xf32> to vector<1x1x8x8xf32>
    tpu.vector_store %arg19[%c0_48, %c3, %c0_49, %c0_50], %131 {strides = array<i32>} : memref<1x4x8x8xf32, #tpu.memory_space<vmem>>, vector<1x1x8x8xf32>,
    %132 = arith.truncf %128 : vector<1x8x8xf32> to vector<1x8x8xbf16>
    "tpu.trace_start"() <{level = 10 : i32, message = "bqk,bkd->bqd"}> : () -> ()
    %cst_51 = arith.constant dense<0.000000e+00> : vector<1x8x8xf32>
    %133 = tpu.matmul %132, %117, %cst_51 {dimension_numbers = #tpu.dot_dimension_numbers<[2], [1], [1], [2], [0, 0, 0, 1, 1, 2], [0], [0]>} : vector<1x8x8xbf16>, vector<1x8x8xbf16>, vector<1x8x8xf32> -> vector<1x8x8xf32>
    "tpu.trace_stop"() : () -> ()
    %134 = vector.shape_cast %133 : vector<1x8x8xf32> to vector<8x8xf32>
    %135 = arith.truncf %134 : vector<8x8xf32> to vector<8x8xbf16>
    %136 = vector.extract_strided_slice %29 {offsets = [24, 0], sizes = [8, 32], strides = [1, 1]} : vector<32x32xbf16> to vector<8x32xbf16>
    %cst_52 = arith.constant dense<0.000000e+00> : vector<8x32xf32>
    %137 = tpu.matmul %135, %136, %cst_52 {dimension_numbers = #tpu.dot_dimension_numbers<[1], [0], [0], [1], [0, 0, 1, 1], [], []>} : vector<8x8xbf16>, vector<8x32xbf16>, vector<8x32xf32> -> vector<8x32xf32>
    %138 = arith.addf %111, %137 : vector<8x32xf32>
    %c0_53 = arith.constant 0 : index
    %c0_54 = arith.constant 0 : index
    %139 = vector.load %arg9[%c0_53, %c0_54] : memref<1x32xf32, #tpu.memory_space<vmem>>, vector<1x32xf32>
    %140 = vector.shape_cast %139 : vector<1x32xf32> to vector<32xf32>
    %141 = vector.shape_cast %140 : vector<32xf32> to vector<1x32xf32>
    %142 = vector.broadcast %141 : vector<1x32xf32> to vector<8x32xf32>
    %143 = arith.addf %138, %142 : vector<8x32xf32>
    %144 = arith.addf %143, %1 : vector<8x32xf32>
    %cst_55 = arith.constant dense<0.000000e+00> : vector<8xf32>
    %145 = vector.multi_reduction <add>, %144, %cst_55 [1] : vector<8x32xf32> to vector<8xf32>
    %146 = vector.shape_cast %145 : vector<8xf32> to vector<8x1xf32>
    %cst_56 = arith.constant 3.200000e+01 : f32
    %147 = vector.broadcast %cst_56 : f32 to vector<8x1xf32>
    %148 = arith.divf %146, %147 : vector<8x1xf32>
    %149 = vector.broadcast %148 : vector<8x1xf32> to vector<8x32xf32>
    %150 = arith.subf %144, %149 : vector<8x32xf32>
    %151 = vector.broadcast %148 : vector<8x1xf32> to vector<8x32xf32>
    %152 = arith.subf %144, %151 : vector<8x32xf32>
    %153 = arith.mulf %150, %152 : vector<8x32xf32>
    %cst_57 = arith.constant dense<0.000000e+00> : vector<8xf32>
    %154 = vector.multi_reduction <add>, %153, %cst_57 [1] : vector<8x32xf32> to vector<8xf32>
    %155 = vector.shape_cast %154 : vector<8xf32> to vector<8x1xf32>
    %cst_58 = arith.constant 3.200000e+01 : f32
    %156 = vector.broadcast %cst_58 : f32 to vector<8x1xf32>
    %157 = arith.divf %155, %156 : vector<8x1xf32>
    %158 = vector.broadcast %148 : vector<8x1xf32> to vector<8x32xf32>
    %159 = arith.subf %144, %158 : vector<8x32xf32>
    %cst_59 = arith.constant 9.99999974E-6 : f32
    %160 = vector.broadcast %cst_59 : f32 to vector<8x1xf32>
    %161 = arith.addf %157, %160 : vector<8x1xf32>
    %162 = math.rsqrt %161 : vector<8x1xf32>
    %163 = vector.broadcast %162 : vector<8x1xf32> to vector<8x32xf32>
    %164 = arith.mulf %159, %163 : vector<8x32xf32>
    %c0_60 = arith.constant 0 : index
    %c0_61 = arith.constant 0 : index
    %165 = vector.load %arg10[%c0_60, %c0_61] : memref<1x32xf32, #tpu.memory_space<vmem>>, vector<1x32xf32>
    %166 = vector.shape_cast %165 : vector<1x32xf32> to vector<32xf32>
    %167 = vector.shape_cast %166 : vector<32xf32> to vector<1x32xf32>
    %168 = vector.broadcast %167 : vector<1x32xf32> to vector<8x32xf32>
    %169 = arith.mulf %164, %168 : vector<8x32xf32>
    %c0_62 = arith.constant 0 : index
    %c0_63 = arith.constant 0 : index
    %170 = vector.load %arg11[%c0_62, %c0_63] : memref<1x32xf32, #tpu.memory_space<vmem>>, vector<1x32xf32>
    %171 = vector.shape_cast %170 : vector<1x32xf32> to vector<32xf32>
    %172 = vector.shape_cast %171 : vector<32xf32> to vector<1x32xf32>
    %173 = vector.broadcast %172 : vector<1x32xf32> to vector<8x32xf32>
    %174 = arith.addf %169, %173 : vector<8x32xf32>
    %175 = arith.truncf %174 : vector<8x32xf32> to vector<8x32xbf16>
    %c0_64 = arith.constant 0 : index
    %c0_65 = arith.constant 0 : index
    %176 = vector.load %arg12[%c0_64, %c0_65] : memref<32x64xbf16, #tpu.memory_space<vmem>>, vector<32x64xbf16>
    %cst_66 = arith.constant dense<0.000000e+00> : vector<8x64xf32>
    %177 = tpu.matmul %175, %176, %cst_66 {dimension_numbers = #tpu.dot_dimension_numbers<[1], [0], [0], [1], [0, 0, 1, 1], [], []>} : vector<8x32xbf16>, vector<32x64xbf16>, vector<8x64xf32> -> vector<8x64xf32>
    %c0_67 = arith.constant 0 : index
    %c0_68 = arith.constant 0 : index
    %178 = vector.load %arg13[%c0_67, %c0_68] : memref<1x64xf32, #tpu.memory_space<vmem>>, vector<1x64xf32>
    %179 = vector.shape_cast %178 : vector<1x64xf32> to vector<64xf32>
    %180 = vector.shape_cast %179 : vector<64xf32> to vector<1x64xf32>
    %181 = vector.broadcast %180 : vector<1x64xf32> to vector<8x64xf32>
    %182 = arith.addf %177, %181 : vector<8x64xf32>
    %cst_69 = arith.constant 0.000000e+00 : f32
    %183 = vector.broadcast %cst_69 : f32 to vector<8x64xf32>
    %184 = arith.maximumf %182, %183 : vector<8x64xf32>
    %185 = arith.truncf %184 : vector<8x64xf32> to vector<8x64xbf16>
    %c0_70 = arith.constant 0 : index
    %c0_71 = arith.constant 0 : index
    %186 = vector.load %arg14[%c0_70, %c0_71] : memref<64x32xbf16, #tpu.memory_space<vmem>>, vector<64x32xbf16>
    %cst_72 = arith.constant dense<0.000000e+00> : vector<8x32xf32>
    %187 = tpu.matmul %185, %186, %cst_72 {dimension_numbers = #tpu.dot_dimension_numbers<[1], [0], [0], [1], [0, 0, 1, 1], [], []>} : vector<8x64xbf16>, vector<64x32xbf16>, vector<8x32xf32> -> vector<8x32xf32>
    %c0_73 = arith.constant 0 : index
    %c0_74 = arith.constant 0 : index
    %188 = vector.load %arg15[%c0_73, %c0_74] : memref<1x32xf32, #tpu.memory_space<vmem>>, vector<1x32xf32>
    %189 = vector.shape_cast %188 : vector<1x32xf32> to vector<32xf32>
    %190 = vector.shape_cast %189 : vector<32xf32> to vector<1x32xf32>
    %191 = vector.broadcast %190 : vector<1x32xf32> to vector<8x32xf32>
    %192 = arith.addf %187, %191 : vector<8x32xf32>
    %193 = arith.addf %192, %174 : vector<8x32xf32>
    %cst_75 = arith.constant dense<0.000000e+00> : vector<8xf32>
    %194 = vector.multi_reduction <add>, %193, %cst_75 [1] : vector<8x32xf32> to vector<8xf32>
    %195 = vector.shape_cast %194 : vector<8xf32> to vector<8x1xf32>
    %cst_76 = arith.constant 3.200000e+01 : f32
    %196 = vector.broadcast %cst_76 : f32 to vector<8x1xf32>
    %197 = arith.divf %195, %196 : vector<8x1xf32>
    %198 = vector.broadcast %197 : vector<8x1xf32> to vector<8x32xf32>
    %199 = arith.subf %193, %198 : vector<8x32xf32>
    %200 = vector.broadcast %197 : vector<8x1xf32> to vector<8x32xf32>
    %201 = arith.subf %193, %200 : vector<8x32xf32>
    %202 = arith.mulf %199, %201 : vector<8x32xf32>
    %cst_77 = arith.constant dense<0.000000e+00> : vector<8xf32>
    %203 = vector.multi_reduction <add>, %202, %cst_77 [1] : vector<8x32xf32> to vector<8xf32>
    %204 = vector.shape_cast %203 : vector<8xf32> to vector<8x1xf32>
    %cst_78 = arith.constant 3.200000e+01 : f32
    %205 = vector.broadcast %cst_78 : f32 to vector<8x1xf32>
    %206 = arith.divf %204, %205 : vector<8x1xf32>
    %207 = vector.broadcast %197 : vector<8x1xf32> to vector<8x32xf32>
    %208 = arith.subf %193, %207 : vector<8x32xf32>
    %cst_79 = arith.constant 9.99999974E-6 : f32
    %209 = vector.broadcast %cst_79 : f32 to vector<8x1xf32>
    %210 = arith.addf %206, %209 : vector<8x1xf32>
    %211 = math.rsqrt %210 : vector<8x1xf32>
    %212 = vector.broadcast %211 : vector<8x1xf32> to vector<8x32xf32>
    %213 = arith.mulf %208, %212 : vector<8x32xf32>
    %c0_80 = arith.constant 0 : index
    %c0_81 = arith.constant 0 : index
    %214 = vector.load %arg16[%c0_80, %c0_81] : memref<1x32xf32, #tpu.memory_space<vmem>>, vector<1x32xf32>
    %215 = vector.shape_cast %214 : vector<1x32xf32> to vector<32xf32>
    %216 = vector.shape_cast %215 : vector<32xf32> to vector<1x32xf32>
    %217 = vector.broadcast %216 : vector<1x32xf32> to vector<8x32xf32>
    %218 = arith.mulf %213, %217 : vector<8x32xf32>
    %c0_82 = arith.constant 0 : index
    %c0_83 = arith.constant 0 : index
    %219 = vector.load %arg17[%c0_82, %c0_83] : memref<1x32xf32, #tpu.memory_space<vmem>>, vector<1x32xf32>
    %220 = vector.shape_cast %219 : vector<1x32xf32> to vector<32xf32>
    %221 = vector.shape_cast %220 : vector<32xf32> to vector<1x32xf32>
    %222 = vector.broadcast %221 : vector<1x32xf32> to vector<8x32xf32>
    %223 = arith.addf %218, %222 : vector<8x32xf32>
    %224 = vector.shape_cast %223 : vector<8x32xf32> to vector<1x8x32xf32>
    %c0_84 = arith.constant 0 : index
    %c0_85 = arith.constant 0 : index
    %c0_86 = arith.constant 0 : index
    %225 = vector.load %arg18[%c0_84, %c0_85, %c0_86] : memref<1x8x32xf32, #tpu.memory_space<vmem>>, vector<1x8x32xf32>
    tpu.vector_store %arg18[%c0_84, %c0_85, %c0_86], %224 {strides = array<i32>} : memref<1x8x32xf32, #tpu.memory_space<vmem>>, vector<1x8x32xf32>,
    return
  }
  func.func @transform_0(%arg0: i32) -> (i32, i32, i32) {
    %c0_i32 = arith.constant 0 : i32
    %c0_i32_0 = arith.constant 0 : i32
    %c0_i32_1 = arith.constant 0 : i32
    return %arg0, %c0_i32, %c0_i32_0 : i32, i32, i32
  }
  func.func @transform_1(%arg0: i32) -> (i32, i32) {
    %c0_i32 = arith.constant 0 : i32
    %c0_i32_0 = arith.constant 0 : i32
    %c0_i32_1 = arith.constant 0 : i32
    return %c0_i32, %c0_i32_0 : i32, i32
  }
  func.func @transform_2(%arg0: i32) -> (i32, i32) {
    %c0_i32 = arith.constant 0 : i32
    %c0_i32_0 = arith.constant 0 : i32
    %c0_i32_1 = arith.constant 0 : i32
    return %c0_i32, %c0_i32_0 : i32, i32
  }
  func.func @transform_3(%arg0: i32) -> (i32, i32) {
    %c0_i32 = arith.constant 0 : i32
    %c0_i32_0 = arith.constant 0 : i32
    %c0_i32_1 = arith.constant 0 : i32
    return %c0_i32, %c0_i32_0 : i32, i32
  }
  func.func @transform_4(%arg0: i32) -> (i32, i32) {
    %c0_i32 = arith.constant 0 : i32
    %c0_i32_0 = arith.constant 0 : i32
    %c0_i32_1 = arith.constant 0 : i32
    return %c0_i32, %c0_i32_0 : i32, i32
  }
  func.func @transform_5(%arg0: i32) -> (i32, i32) {
    %c0_i32 = arith.constant 0 : i32
    %c0_i32_0 = arith.constant 0 : i32
    %c0_i32_1 = arith.constant 0 : i32
    return %c0_i32, %c0_i32_0 : i32, i32
  }
  func.func @transform_6(%arg0: i32) -> (i32, i32) {
    %c0_i32 = arith.constant 0 : i32
    %c0_i32_0 = arith.constant 0 : i32
    %c0_i32_1 = arith.constant 0 : i32
    return %c0_i32, %c0_i32_0 : i32, i32
  }
  func.func @transform_7(%arg0: i32) -> (i32, i32) {
    %c0_i32 = arith.constant 0 : i32
    %c0_i32_0 = arith.constant 0 : i32
    %c0_i32_1 = arith.constant 0 : i32
    return %c0_i32, %c0_i32_0 : i32, i32
  }
  func.func @transform_8(%arg0: i32) -> (i32, i32) {
    %c0_i32 = arith.constant 0 : i32
    %c0_i32_0 = arith.constant 0 : i32
    %c0_i32_1 = arith.constant 0 : i32
    return %c0_i32, %c0_i32_0 : i32, i32
  }
  func.func @transform_9(%arg0: i32) -> (i32, i32) {
    %c0_i32 = arith.constant 0 : i32
    %c0_i32_0 = arith.constant 0 : i32
    %c0_i32_1 = arith.constant 0 : i32
    return %c0_i32, %c0_i32_0 : i32, i32
  }
  func.func @transform_10(%arg0: i32) -> (i32, i32) {
    %c0_i32 = arith.constant 0 : i32
    %c0_i32_0 = arith.constant 0 : i32
    %c0_i32_1 = arith.constant 0 : i32
    return %c0_i32, %c0_i32_0 : i32, i32
  }
  func.func @transform_11(%arg0: i32) -> (i32, i32) {
    %c0_i32 = arith.constant 0 : i32
    %c0_i32_0 = arith.constant 0 : i32
    %c0_i32_1 = arith.constant 0 : i32
    return %c0_i32, %c0_i32_0 : i32, i32
  }
  func.func @transform_12(%arg0: i32) -> (i32, i32) {
    %c0_i32 = arith.constant 0 : i32
    %c0_i32_0 = arith.constant 0 : i32
    %c0_i32_1 = arith.constant 0 : i32
    return %c0_i32, %c0_i32_0 : i32, i32
  }
  func.func @transform_13(%arg0: i32) -> (i32, i32) {
    %c0_i32 = arith.constant 0 : i32
    %c0_i32_0 = arith.constant 0 : i32
    %c0_i32_1 = arith.constant 0 : i32
    return %c0_i32, %c0_i32_0 : i32, i32
  }
  func.func @transform_14(%arg0: i32) -> (i32, i32) {
    %c0_i32 = arith.constant 0 : i32
    %c0_i32_0 = arith.constant 0 : i32
    %c0_i32_1 = arith.constant 0 : i32
    return %c0_i32, %c0_i32_0 : i32, i32
  }
  func.func @transform_15(%arg0: i32) -> (i32, i32) {
    %c0_i32 = arith.constant 0 : i32
    %c0_i32_0 = arith.constant 0 : i32
    %c0_i32_1 = arith.constant 0 : i32
    return %c0_i32, %c0_i32_0 : i32, i32
  }
  func.func @transform_16(%arg0: i32) -> (i32, i32) {
    %c0_i32 = arith.constant 0 : i32
    %c0_i32_0 = arith.constant 0 : i32
    %c0_i32_1 = arith.constant 0 : i32
    return %c0_i32, %c0_i32_0 : i32, i32
  }
  func.func @transform_17(%arg0: i32) -> (i32, i32, i32) {
    %c0_i32 = arith.constant 0 : i32
    %c0_i32_0 = arith.constant 0 : i32
    %c0_i32_1 = arith.constant 0 : i32
    return %arg0, %c0_i32, %c0_i32_0 : i32, i32, i32
  }
  func.func @transform_18(%arg0: i32) -> (i32, i32, i32, i32) {
    %c0_i32 = arith.constant 0 : i32
    %c0_i32_0 = arith.constant 0 : i32
    %c0_i32_1 = arith.constant 0 : i32
    %c0_i32_2 = arith.constant 0 : i32
    return %arg0, %c0_i32, %c0_i32_0, %c0_i32_1 : i32, i32, i32, i32
  }
}

</mosaic_0001>

<llo_original>
// kernel: tpu_custom_call.1
$region0: #{tpu_custom_call.1}
  #allocation0 [shape = 'u32[]', space=smem, size = 0x4, offset = 0x4, fixed_abs, tag = 'smem constant byte address 0x4 - core index']
  #allocation1 [shape = 'u32[144,128]{1,0:T(1,128)}', space=vmem, size = 0x12000, scoped, tag = 'internal scratch']
  %s0 = inlined_call_operand.vmem [shape: f32[2,8,32], index: 0, kind: input, shape index: {}]
  %s1 = inlined_call_operand.vmem [shape: bf16[32,32], index: 1, kind: input, shape index: {}]
  %s2 = inlined_call_operand.hbm [shape: f32[1,32], index: 2, kind: input, shape index: {}]
  %s3 = inlined_call_operand.vmem [shape: bf16[32,32], index: 3, kind: input, shape index: {}]
  %s4 = inlined_call_operand.hbm [shape: f32[1,32], index: 4, kind: input, shape index: {}]
  %s5 = inlined_call_operand.hbm [shape: bf16[32,32], index: 5, kind: input, shape index: {}]
  %s6 = inlined_call_operand.hbm [shape: f32[1,32], index: 6, kind: input, shape index: {}]
  %s7 = inlined_call_operand.hbm [shape: bf16[32,32], index: 7, kind: input, shape index: {}]
  %s8 = inlined_call_operand.hbm [shape: f32[1,32], index: 8, kind: input, shape index: {}]
  %s9 = inlined_call_operand.hbm [shape: f32[1,32], index: 9, kind: input, shape index: {}]
  %s10 = inlined_call_operand.vmem [shape: f32[1,32], index: 10, kind: input, shape index: {}]
  %s11 = inlined_call_operand.vmem [shape: bf16[32,64], index: 11, kind: input, shape index: {}]
  %s12 = inlined_call_operand.vmem [shape: f32[1,64], index: 12, kind: input, shape index: {}]
  %s13 = inlined_call_operand.vmem [shape: bf16[64,32], index: 13, kind: input, shape index: {}]
  %s14 = inlined_call_operand.vmem [shape: f32[1,32], index: 14, kind: input, shape index: {}]
  %s15 = inlined_call_operand.vmem [shape: f32[1,32], index: 15, kind: input, shape index: {}]
  %s16 = inlined_call_operand.vmem [shape: f32[1,32], index: 16, kind: input, shape index: {}]
  %s17 = inlined_call_operand.hbm [shape: f32[2,8,32], index: 17, kind: output, shape index: {0}]
  %s18 = inlined_call_operand.hbm [shape: f32[2,4,8,8], index: 18, kind: output, shape index: {1}]
  %19 = xla_tuple %s17, %s18
  %s20 = sld [smem:[#allocation0]]
  $region137: #{tpu_custom_call.1} parent=0
    _
  %s22 = ssub.s32 1, %s20
  %s23 = scalar_select 0, %s22, %s20
  $region1: #{tpu_custom_call.1} parent=0
    #allocation2 [shape = 'u8[512]{0}', space=vmem, size = 0x400, scoped, tag = 'input window, operand 2, single buffered']
    #allocation3 [shape = 's32[2]{0}', space=sflag, size = 0x8, scoped, tag = 'scoped memory for tpu_custom_call.1']
    #allocation4 [shape = 's32[2]{0}', space=sflag, size = 0x8, scoped, tag = 'scoped memory for tpu_custom_call.1']
    #allocation5 [shape = 'u8[512]{0}', space=vmem, size = 0x400, scoped, tag = 'input window, operand 4, single buffered']
    #allocation6 [shape = 's32[1]{0}', space=sflag, size = 0x4, scoped, tag = 'scoped memory for tpu_custom_call.1']
    #allocation7 [shape = 'u8[8192]{0}', space=vmem, size = 0x2000, scoped, tag = 'input window, operand 5, single buffered']
    #allocation8 [shape = 'u8[512]{0}', space=vmem, size = 0x400, scoped, tag = 'input window, operand 6, single buffered']
    #allocation9 [shape = 's32[1]{0}', space=sflag, size = 0x4, scoped, tag = 'scoped memory for tpu_custom_call.1']
    #allocation10 [shape = 'u8[8192]{0}', space=vmem, size = 0x2000, scoped, tag = 'input window, operand 7, single buffered']
    #allocation11 [shape = 'u8[512]{0}', space=vmem, size = 0x400, scoped, tag = 'input window, operand 8, single buffered']
    #allocation12 [shape = 's32[1]{0}', space=sflag, size = 0x4, scoped, tag = 'scoped memory for tpu_custom_call.1']
    #allocation13 [shape = 'u8[512]{0}', space=vmem, size = 0x400, scoped, tag = 'input window, operand 9, single buffered']
    #allocation14 [shape = 'u8[8192]{0}', space=vmem, size = 0x2000, scoped, tag = 'output window, operand 0']
    #allocation15 [shape = 'u8[32768]{0}', space=vmem, size = 0x8000, scoped, tag = 'output window, operand 1']
    #allocation16 [shape = 's32[2]{0}', space=sflag, size = 0x8, scoped, tag = 'scoped memory for tpu_custom_call.1']
    %24 = vsyncpa [#allocation3], 0
    %25 = vsyncpa [#allocation6], 0
    %26 = vsyncpa [#allocation9], 0
    %27 = vsyncpa [#allocation12], 0
    %28 = vsyncpa [#allocation4], 0
    %s29 = scalar_lea.sflag [#allocation4], 1
    %30 = vsyncpa %s29, 0
    %31 = vsyncpa [#allocation16], 0
    %s32 = scalar_lea.sflag [#allocation16], 1
    %33 = vsyncpa %s32, 0
    loop: start=0, step=1, limit=4
    $region2: #{tpu_custom_call.1} parent=1 // loop_pre_header
      _
    $region3: #{tpu_custom_call.1} parent=1 // loop_header
      %s35 = sphi 0, %s39
      %p36 = scmp.ge.s32.totalorder %s35, 4
      %s45 = sphi 0, %s47
      %s48 = sphi 0, %s45
      %s49 = sphi 0, %s48
      %s65 = sphi 0, %s49
      %s69 = sphi 0, %s69
      %s71 = sphi 0, %s69
      %s72 = sphi 0, %s71
      %s86 = sphi 0, %s72
      %s90 = sphi 0, %s90
      %s92 = sphi 0, %s90
      %s93 = sphi 0, %s92
      %s107 = sphi 0, %s93
      %s111 = sphi 0, %s111
      %s113 = sphi 0, %s111
      %s114 = sphi 0, %s113
      %s128 = sphi 0, %s114
      %s132 = sphi 0, %s132
      %s134 = sphi 0, %s132
      %s135 = sphi 0, %s134
      %s149 = sphi 0, %s135
      %s153 = sphi 0, %s153
      %s155 = sphi 0, %s153
      %s156 = sphi 0, %s155
      %s170 = sphi 0, %s156
      %s174 = sphi 0, %s174
      %s176 = sphi 0, %s174
      %s177 = sphi 0, %s176
      %s191 = sphi 0, %s177
      %s195 = sphi 0, %s195
      %s197 = sphi 0, %s195
      %s198 = sphi 0, %s197
      %s212 = sphi 0, %s198
      %s216 = sphi 0, %s216
      %s218 = sphi 0, %s216
      %s219 = sphi 0, %s218
      %s233 = sphi 0, %s219
      %s237 = sphi 0, %s237
      %s239 = sphi 0, %s237
      %s240 = sphi 0, %s239
      %s254 = sphi 0, %s240
      %s258 = sphi 0, %s258
      %s260 = sphi 0, %s258
      %s261 = sphi 0, %s260
      %s275 = sphi 0, %s261
      %s279 = sphi 0, %s279
      %s281 = sphi 0, %s279
      %s282 = sphi 0, %s281
      %s296 = sphi 0, %s282
      %s300 = sphi 0, %s300
      %s302 = sphi 0, %s300
      %s303 = sphi 0, %s302
      %s317 = sphi 0, %s303
      %s321 = sphi 0, %s321
      %s323 = sphi 0, %s321
      %s324 = sphi 0, %s323
      %s338 = sphi 0, %s324
      %s342 = sphi 0, %s342
      %s344 = sphi 0, %s342
      %s345 = sphi 0, %s344
      %s359 = sphi 0, %s345
      %s363 = sphi 0, %s363
      %s365 = sphi 0, %s363
      %s366 = sphi 0, %s365
      %s380 = sphi 0, %s366
      %s384 = sphi 0, %s384
      %s386 = sphi 0, %s384
      %s387 = sphi 0, %s386
      %s401 = sphi 0, %s387
      %s407 = sphi 0, %s409
      %s410 = sphi 0, %s407
      %s411 = sphi 0, %s410
      %s427 = sphi 0, %s411
      %s433 = sphi 0, %s435
      %s436 = sphi 0, %s433
      %s437 = sphi 0, %s436
      %s453 = sphi 0, %s437
    $region4: #{tpu_custom_call.1} parent=1 // loop_header_branch
      %38 = sbr.rel (%p36) target = $region8
    $region5: #{tpu_custom_call.1} parent=1 // loop_body
      %s40 = ssub.s32 %s35, 1
      %s41 = ssub.s32 %s35, 2
      %s42 = sadd.s32 %s35, 1
      %s43 = ssub.s32 %s35, %s42
      %p44 = scmp.eq.s32.totalorder %s43, 0
      %s46 = sadd.s32 %s45, 1
      %s47 = scalar_select %p44, %s45, %s46
      %p50 = pneg %p44
      %p51 = scmp.eq.s32.totalorder %s35, 1
      %p52 = por %p50, %p51
      %p53 = scmp.ne.s32.totalorder %s45, %s48
      %p54 = scmp.eq.s32.totalorder %s35, 0
      %p55 = por %p53, %p54
      %p56 = scmp.ne.s32.totalorder %s45, %s48
      %p57 = scmp.eq.s32.totalorder %s40, 1
      %p58 = por %p56, %p57
      %p59 = scmp.ne.s32.totalorder %s48, %s49
      %p60 = scmp.eq.s32.totalorder %s40, 0
      %p61 = por %p59, %p60
      %p62 = scmp.ne.s32.totalorder %s48, %s49
      %p63 = scmp.eq.s32.totalorder %s41, 1
      %p64 = por %p62, %p63
      %p66 = scmp.ne.s32.totalorder %s49, %s65
      %p67 = scmp.eq.s32.totalorder %s41, 0
      %p68 = por %p66, %p67
      %s70 = sadd.s32 %s69, 1
      %p73 = scmp.eq.s32.totalorder %s35, 1
      %p74 = scmp.ne.s32.totalorder %s69, %s71
      %p75 = scmp.eq.s32.totalorder %s35, 0
      %p76 = por %p74, %p75
      %p77 = scmp.ne.s32.totalorder %s69, %s71
      %p78 = scmp.eq.s32.totalorder %s40, 1
      %p79 = por %p77, %p78
      %p80 = scmp.ne.s32.totalorder %s71, %s72
      %p81 = scmp.eq.s32.totalorder %s40, 0
      %p82 = por %p80, %p81
      %p83 = scmp.ne.s32.totalorder %s71, %s72
      %p84 = scmp.eq.s32.totalorder %s41, 1
      %p85 = por %p83, %p84
      %p87 = scmp.ne.s32.totalorder %s72, %s86
      %p88 = scmp.eq.s32.totalorder %s41, 0
      %p89 = por %p87, %p88
      %s91 = sadd.s32 %s90, 1
      %p94 = scmp.eq.s32.totalorder %s35, 1
      %p95 = scmp.ne.s32.totalorder %s90, %s92
      %p96 = scmp.eq.s32.totalorder %s35, 0
      %p97 = por %p95, %p96
      %p98 = scmp.ne.s32.totalorder %s90, %s92
      %p99 = scmp.eq.s32.totalorder %s40, 1
      %p100 = por %p98, %p99
      %p101 = scmp.ne.s32.totalorder %s92, %s93
      %p102 = scmp.eq.s32.totalorder %s40, 0
      %p103 = por %p101, %p102
      %p104 = scmp.ne.s32.totalorder %s92, %s93
      %p105 = scmp.eq.s32.totalorder %s41, 1
      %p106 = por %p104, %p105
      %p108 = scmp.ne.s32.totalorder %s93, %s107
      %p109 = scmp.eq.s32.totalorder %s41, 0
      %p110 = por %p108, %p109
      %s112 = sadd.s32 %s111, 1
      %p115 = scmp.eq.s32.totalorder %s35, 1
      %p116 = scmp.ne.s32.totalorder %s111, %s113
      %p117 = scmp.eq.s32.totalorder %s35, 0
      %p118 = por %p116, %p117
      %p119 = scmp.ne.s32.totalorder %s111, %s113
      %p120 = scmp.eq.s32.totalorder %s40, 1
      %p121 = por %p119, %p120
      %p122 = scmp.ne.s32.totalorder %s113, %s114
      %p123 = scmp.eq.s32.totalorder %s40, 0
      %p124 = por %p122, %p123
      %p125 = scmp.ne.s32.totalorder %s113, %s114
      %p126 = scmp.eq.s32.totalorder %s41, 1
      %p127 = por %p125, %p126
      %p129 = scmp.ne.s32.totalorder %s114, %s128
      %p130 = scmp.eq.s32.totalorder %s41, 0
      %p131 = por %p129, %p130
      %s133 = sadd.s32 %s132, 1
      %p136 = scmp.eq.s32.totalorder %s35, 1
      %p137 = scmp.ne.s32.totalorder %s132, %s134
      %p138 = scmp.eq.s32.totalorder %s35, 0
      %p139 = por %p137, %p138
      %p140 = scmp.ne.s32.totalorder %s132, %s134
      %p141 = scmp.eq.s32.totalorder %s40, 1
      %p142 = por %p140, %p141
      %p143 = scmp.ne.s32.totalorder %s134, %s135
      %p144 = scmp.eq.s32.totalorder %s40, 0
      %p145 = por %p143, %p144
      %p146 = scmp.ne.s32.totalorder %s134, %s135
      %p147 = scmp.eq.s32.totalorder %s41, 1
      %p148 = por %p146, %p147
      %p150 = scmp.ne.s32.totalorder %s135, %s149
      %p151 = scmp.eq.s32.totalorder %s41, 0
      %p152 = por %p150, %p151
      %s154 = sadd.s32 %s153, 1
      %p157 = scmp.eq.s32.totalorder %s35, 1
      %p158 = scmp.ne.s32.totalorder %s153, %s155
      %p159 = scmp.eq.s32.totalorder %s35, 0
      %p160 = por %p158, %p159
      %p161 = scmp.ne.s32.totalorder %s153, %s155
      %p162 = scmp.eq.s32.totalorder %s40, 1
      %p163 = por %p161, %p162
      %p164 = scmp.ne.s32.totalorder %s155, %s156
      %p165 = scmp.eq.s32.totalorder %s40, 0
      %p166 = por %p164, %p165
      %p167 = scmp.ne.s32.totalorder %s155, %s156
      %p168 = scmp.eq.s32.totalorder %s41, 1
      %p169 = por %p167, %p168
      %p171 = scmp.ne.s32.totalorder %s156, %s170
      %p172 = scmp.eq.s32.totalorder %s41, 0
      %p173 = por %p171, %p172
      %s175 = sadd.s32 %s174, 1
      %p178 = scmp.eq.s32.totalorder %s35, 1
      %p179 = scmp.ne.s32.totalorder %s174, %s176
      %p180 = scmp.eq.s32.totalorder %s35, 0
      %p181 = por %p179, %p180
      %p182 = scmp.ne.s32.totalorder %s174, %s176
      %p183 = scmp.eq.s32.totalorder %s40, 1
      %p184 = por %p182, %p183
      %p185 = scmp.ne.s32.totalorder %s176, %s177
      %p186 = scmp.eq.s32.totalorder %s40, 0
      %p187 = por %p185, %p186
      %p188 = scmp.ne.s32.totalorder %s176, %s177
      %p189 = scmp.eq.s32.totalorder %s41, 1
      %p190 = por %p188, %p189
      %p192 = scmp.ne.s32.totalorder %s177, %s191
      %p193 = scmp.eq.s32.totalorder %s41, 0
      %p194 = por %p192, %p193
      %s196 = sadd.s32 %s195, 1
      %p199 = scmp.eq.s32.totalorder %s35, 1
      %p200 = scmp.ne.s32.totalorder %s195, %s197
      %p201 = scmp.eq.s32.totalorder %s35, 0
      %p202 = por %p200, %p201
      %p203 = scmp.ne.s32.totalorder %s195, %s197
      %p204 = scmp.eq.s32.totalorder %s40, 1
      %p205 = por %p203, %p204
      %p206 = scmp.ne.s32.totalorder %s197, %s198
      %p207 = scmp.eq.s32.totalorder %s40, 0
      %p208 = por %p206, %p207
      %p209 = scmp.ne.s32.totalorder %s197, %s198
      %p210 = scmp.eq.s32.totalorder %s41, 1
      %p211 = por %p209, %p210
      %p213 = scmp.ne.s32.totalorder %s198, %s212
      %p214 = scmp.eq.s32.totalorder %s41, 0
      %p215 = por %p213, %p214
      %s217 = sadd.s32 %s216, 1
      %p220 = scmp.eq.s32.totalorder %s35, 1
      %p221 = scmp.ne.s32.totalorder %s216, %s218
      %p222 = scmp.eq.s32.totalorder %s35, 0
      %p223 = por %p221, %p222
      %p224 = scmp.ne.s32.totalorder %s216, %s218
      %p225 = scmp.eq.s32.totalorder %s40, 1
      %p226 = por %p224, %p225
      %p227 = scmp.ne.s32.totalorder %s218, %s219
      %p228 = scmp.eq.s32.totalorder %s40, 0
      %p229 = por %p227, %p228
      %p230 = scmp.ne.s32.totalorder %s218, %s219
      %p231 = scmp.eq.s32.totalorder %s41, 1
      %p232 = por %p230, %p231
      %p234 = scmp.ne.s32.totalorder %s219, %s233
      %p235 = scmp.eq.s32.totalorder %s41, 0
      %p236 = por %p234, %p235
      %s238 = sadd.s32 %s237, 1
      %p241 = scmp.eq.s32.totalorder %s35, 1
      %p242 = scmp.ne.s32.totalorder %s237, %s239
      %p243 = scmp.eq.s32.totalorder %s35, 0
      %p244 = por %p242, %p243
      %p245 = scmp.ne.s32.totalorder %s237, %s239
      %p246 = scmp.eq.s32.totalorder %s40, 1
      %p247 = por %p245, %p246
      %p248 = scmp.ne.s32.totalorder %s239, %s240
      %p249 = scmp.eq.s32.totalorder %s40, 0
      %p250 = por %p248, %p249
      %p251 = scmp.ne.s32.totalorder %s239, %s240
      %p252 = scmp.eq.s32.totalorder %s41, 1
      %p253 = por %p251, %p252
      %p255 = scmp.ne.s32.totalorder %s240, %s254
      %p256 = scmp.eq.s32.totalorder %s41, 0
      %p257 = por %p255, %p256
      %s259 = sadd.s32 %s258, 1
      %p262 = scmp.eq.s32.totalorder %s35, 1
      %p263 = scmp.ne.s32.totalorder %s258, %s260
      %p264 = scmp.eq.s32.totalorder %s35, 0
      %p265 = por %p263, %p264
      %p266 = scmp.ne.s32.totalorder %s258, %s260
      %p267 = scmp.eq.s32.totalorder %s40, 1
      %p268 = por %p266, %p267
      %p269 = scmp.ne.s32.totalorder %s260, %s261
      %p270 = scmp.eq.s32.totalorder %s40, 0
      %p271 = por %p269, %p270
      %p272 = scmp.ne.s32.totalorder %s260, %s261
      %p273 = scmp.eq.s32.totalorder %s41, 1
      %p274 = por %p272, %p273
      %p276 = scmp.ne.s32.totalorder %s261, %s275
      %p277 = scmp.eq.s32.totalorder %s41, 0
      %p278 = por %p276, %p277
      %s280 = sadd.s32 %s279, 1
      %p283 = scmp.eq.s32.totalorder %s35, 1
      %p284 = scmp.ne.s32.totalorder %s279, %s281
      %p285 = scmp.eq.s32.totalorder %s35, 0
      %p286 = por %p284, %p285
      %p287 = scmp.ne.s32.totalorder %s279, %s281
      %p288 = scmp.eq.s32.totalorder %s40, 1
      %p289 = por %p287, %p288
      %p290 = scmp.ne.s32.totalorder %s281, %s282
      %p291 = scmp.eq.s32.totalorder %s40, 0
      %p292 = por %p290, %p291
      %p293 = scmp.ne.s32.totalorder %s281, %s282
      %p294 = scmp.eq.s32.totalorder %s41, 1
      %p295 = por %p293, %p294
      %p297 = scmp.ne.s32.totalorder %s282, %s296
      %p298 = scmp.eq.s32.totalorder %s41, 0
      %p299 = por %p297, %p298
      %s301 = sadd.s32 %s300, 1
      %p304 = scmp.eq.s32.totalorder %s35, 1
      %p305 = scmp.ne.s32.totalorder %s300, %s302
      %p306 = scmp.eq.s32.totalorder %s35, 0
      %p307 = por %p305, %p306
      %p308 = scmp.ne.s32.totalorder %s300, %s302
      %p309 = scmp.eq.s32.totalorder %s40, 1
      %p310 = por %p308, %p309
      %p311 = scmp.ne.s32.totalorder %s302, %s303
      %p312 = scmp.eq.s32.totalorder %s40, 0
      %p313 = por %p311, %p312
      %p314 = scmp.ne.s32.totalorder %s302, %s303
      %p315 = scmp.eq.s32.totalorder %s41, 1
      %p316 = por %p314, %p315
      %p318 = scmp.ne.s32.totalorder %s303, %s317
      %p319 = scmp.eq.s32.totalorder %s41, 0
      %p320 = por %p318, %p319
      %s322 = sadd.s32 %s321, 1
      %p325 = scmp.eq.s32.totalorder %s35, 1
      %p326 = scmp.ne.s32.totalorder %s321, %s323
      %p327 = scmp.eq.s32.totalorder %s35, 0
      %p328 = por %p326, %p327
      %p329 = scmp.ne.s32.totalorder %s321, %s323
      %p330 = scmp.eq.s32.totalorder %s40, 1
      %p331 = por %p329, %p330
      %p332 = scmp.ne.s32.totalorder %s323, %s324
      %p333 = scmp.eq.s32.totalorder %s40, 0
      %p334 = por %p332, %p333
      %p335 = scmp.ne.s32.totalorder %s323, %s324
      %p336 = scmp.eq.s32.totalorder %s41, 1
      %p337 = por %p335, %p336
      %p339 = scmp.ne.s32.totalorder %s324, %s338
      %p340 = scmp.eq.s32.totalorder %s41, 0
      %p341 = por %p339, %p340
      %s343 = sadd.s32 %s342, 1
      %p346 = scmp.eq.s32.totalorder %s35, 1
      %p347 = scmp.ne.s32.totalorder %s342, %s344
      %p348 = scmp.eq.s32.totalorder %s35, 0
      %p349 = por %p347, %p348
      %p350 = scmp.ne.s32.totalorder %s342, %s344
      %p351 = scmp.eq.s32.totalorder %s40, 1
      %p352 = por %p350, %p351
      %p353 = scmp.ne.s32.totalorder %s344, %s345
      %p354 = scmp.eq.s32.totalorder %s40, 0
      %p355 = por %p353, %p354
      %p356 = scmp.ne.s32.totalorder %s344, %s345
      %p357 = scmp.eq.s32.totalorder %s41, 1
      %p358 = por %p356, %p357
      %p360 = scmp.ne.s32.totalorder %s345, %s359
      %p361 = scmp.eq.s32.totalorder %s41, 0
      %p362 = por %p360, %p361
      %s364 = sadd.s32 %s363, 1
      %p367 = scmp.eq.s32.totalorder %s35, 1
      %p368 = scmp.ne.s32.totalorder %s363, %s365
      %p369 = scmp.eq.s32.totalorder %s35, 0
      %p370 = por %p368, %p369
      %p371 = scmp.ne.s32.totalorder %s363, %s365
      %p372 = scmp.eq.s32.totalorder %s40, 1
      %p373 = por %p371, %p372
      %p374 = scmp.ne.s32.totalorder %s365, %s366
      %p375 = scmp.eq.s32.totalorder %s40, 0
      %p376 = por %p374, %p375
      %p377 = scmp.ne.s32.totalorder %s365, %s366
      %p378 = scmp.eq.s32.totalorder %s41, 1
      %p379 = por %p377, %p378
      %p381 = scmp.ne.s32.totalorder %s366, %s380
      %p382 = scmp.eq.s32.totalorder %s41, 0
      %p383 = por %p381, %p382
      %s385 = sadd.s32 %s384, 1
      %p388 = scmp.eq.s32.totalorder %s35, 1
      %p389 = scmp.ne.s32.totalorder %s384, %s386
      %p390 = scmp.eq.s32.totalorder %s35, 0
      %p391 = por %p389, %p390
      %p392 = scmp.ne.s32.totalorder %s384, %s386
      %p393 = scmp.eq.s32.totalorder %s40, 1
      %p394 = por %p392, %p393
      %p395 = scmp.ne.s32.totalorder %s386, %s387
      %p396 = scmp.eq.s32.totalorder %s40, 0
      %p397 = por %p395, %p396
      %p398 = scmp.ne.s32.totalorder %s386, %s387
      %p399 = scmp.eq.s32.totalorder %s41, 1
      %p400 = por %p398, %p399
      %p402 = scmp.ne.s32.totalorder %s387, %s401
      %p403 = scmp.eq.s32.totalorder %s41, 0
      %p404 = por %p402, %p403
      %s405 = ssub.s32 %s35, %s42
      %p406 = scmp.eq.s32.totalorder %s405, 0
      %s408 = sadd.s32 %s407, 1
      %s409 = scalar_select %p406, %s407, %s408
      %p412 = pneg %p406
      %p413 = scmp.eq.s32.totalorder %s35, 1
      %p414 = por %p412, %p413
      %p415 = scmp.ne.s32.totalorder %s407, %s410
      %p416 = scmp.eq.s32.totalorder %s35, 0
      %p417 = por %p415, %p416
      %p418 = scmp.ne.s32.totalorder %s407, %s410
      %p419 = scmp.eq.s32.totalorder %s40, 1
      %p420 = por %p418, %p419
      %p421 = scmp.ne.s32.totalorder %s410, %s411
      %p422 = scmp.eq.s32.totalorder %s40, 0
      %p423 = por %p421, %p422
      %p424 = scmp.ne.s32.totalorder %s410, %s411
      %p425 = scmp.eq.s32.totalorder %s41, 1
      %p426 = por %p424, %p425
      %p428 = scmp.ne.s32.totalorder %s411, %s427
      %p429 = scmp.eq.s32.totalorder %s41, 0
      %p430 = por %p428, %p429
      %s431 = ssub.s32 %s35, %s42
      %p432 = scmp.eq.s32.totalorder %s431, 0
      %s434 = sadd.s32 %s433, 1
      %s435 = scalar_select %p432, %s433, %s434
      %p438 = pneg %p432
      %p439 = scmp.eq.s32.totalorder %s35, 1
      %p440 = por %p438, %p439
      %p441 = scmp.ne.s32.totalorder %s433, %s436
      %p442 = scmp.eq.s32.totalorder %s35, 0
      %p443 = por %p441, %p442
      %p444 = scmp.ne.s32.totalorder %s433, %s436
      %p445 = scmp.eq.s32.totalorder %s40, 1
      %p446 = por %p444, %p445
      %p447 = scmp.ne.s32.totalorder %s436, %s437
      %p448 = scmp.eq.s32.totalorder %s40, 0
      %p449 = por %p447, %p448
      %p450 = scmp.ne.s32.totalorder %s436, %s437
      %p451 = scmp.eq.s32.totalorder %s41, 1
      %p452 = por %p450, %p451
      %p454 = scmp.ne.s32.totalorder %s437, %s453
      %p455 = scmp.eq.s32.totalorder %s41, 0
      %p456 = por %p454, %p455
      %p457 = scmp.le.s32.totalorder 1, %s35
      %p458 = scmp.lt.s32.totalorder %s35, 3
      %p459 = pnand %p457, %p458
      %p460 = pneg %p459
      // Predicated region
      $region9: #{tpu_custom_call.1} parent=5 // pred_check
        _
      $region10: #{tpu_custom_call.1} parent=5 // pred_check_branch
        %462 = sbr.rel (%p459) target = $region12
      $region11: #{tpu_custom_call.1} parent=5 // pred_region
        %s463 = ssub.s32 %s35, 1
        // Predicated region
        $region13: #{tpu_custom_call.1} parent=11 // pred_check
          %p464 = pneg %p82
        $region14: #{tpu_custom_call.1} parent=11 // pred_check_branch
          %466 = sbr.rel (%p464) target = $region16
        $region15: #{tpu_custom_call.1} parent=11 // pred_region
          _
        $region16: #{tpu_custom_call.1} parent=11 // pred_fallthru
          _
        // Predicated region
        $region17: #{tpu_custom_call.1} parent=11 // pred_check
          %p467 = pneg %p103
        $region18: #{tpu_custom_call.1} parent=11 // pred_check_branch
          %469 = sbr.rel (%p467) target = $region20
        $region19: #{tpu_custom_call.1} parent=11 // pred_region
          %s471 = ssub.s32 16, 16
          %472 = vsyncadd [#allocation3], %s471
          %s474 = sshll.u32 [#allocation2], 4
          %s475 = int_to_ptr.vmem [resolvable:$true] %s474
          %477 = dma.hbm_to_vmem [thread:$0]  %s2, 16, %s475, [#allocation3]
        $region20: #{tpu_custom_call.1} parent=11 // pred_fallthru
          _
        // Predicated region
        $region21: #{tpu_custom_call.1} parent=11 // pred_check
          %p478 = pneg %p124
        $region22: #{tpu_custom_call.1} parent=11 // pred_check_branch
          %480 = sbr.rel (%p478) target = $region24
        $region23: #{tpu_custom_call.1} parent=11 // pred_region
          _
        $region24: #{tpu_custom_call.1} parent=11 // pred_fallthru
          _
        // Predicated region
        $region25: #{tpu_custom_call.1} parent=11 // pred_check
          %p481 = pneg %p145
        $region26: #{tpu_custom_call.1} parent=11 // pred_check_branch
          %483 = sbr.rel (%p481) target = $region28
        $region27: #{tpu_custom_call.1} parent=11 // pred_region
          %s485 = ssub.s32 16, 16
          %486 = vsyncadd [#allocation6], %s485
          %s488 = sshll.u32 [#allocation5], 4
          %s489 = int_to_ptr.vmem [resolvable:$true] %s488
          %491 = dma.hbm_to_vmem [thread:$0]  %s4, 16, %s489, [#allocation6]
        $region28: #{tpu_custom_call.1} parent=11 // pred_fallthru
          _
        // Predicated region
        $region29: #{tpu_custom_call.1} parent=11 // pred_check
          %p492 = pneg %p166
        $region30: #{tpu_custom_call.1} parent=11 // pred_check_branch
          %494 = sbr.rel (%p492) target = $region32
        $region31: #{tpu_custom_call.1} parent=11 // pred_region
          %s496 = ssub.s32 256, 256
          %497 = vsyncadd [#allocation6], %s496
          %s498 = sshll.u32 [#allocation7], 4
          %s499 = int_to_ptr.vmem [resolvable:$true] %s498
          %504 = dma.hbm_to_vmem [thread:$0]  %s5, 256, %s499, [#allocation6], 64, 64, 4
        $region32: #{tpu_custom_call.1} parent=11 // pred_fallthru
          _
        // Predicated region
        $region33: #{tpu_custom_call.1} parent=11 // pred_check
          %p505 = pneg %p187
        $region34: #{tpu_custom_call.1} parent=11 // pred_check_branch
          %507 = sbr.rel (%p505) target = $region36
        $region35: #{tpu_custom_call.1} parent=11 // pred_region
          %s509 = ssub.s32 16, 16
          %510 = vsyncadd [#allocation9], %s509
          %s512 = sshll.u32 [#allocation8], 4
          %s513 = int_to_ptr.vmem [resolvable:$true] %s512
          %515 = dma.hbm_to_vmem [thread:$0]  %s6, 16, %s513, [#allocation9]
        $region36: #{tpu_custom_call.1} parent=11 // pred_fallthru
          _
        // Predicated region
        $region37: #{tpu_custom_call.1} parent=11 // pred_check
          %p516 = pneg %p208
        $region38: #{tpu_custom_call.1} parent=11 // pred_check_branch
          %518 = sbr.rel (%p516) target = $region40
        $region39: #{tpu_custom_call.1} parent=11 // pred_region
          %s520 = ssub.s32 256, 256
          %521 = vsyncadd [#allocation9], %s520
          %s522 = sshll.u32 [#allocation10], 4
          %s523 = int_to_ptr.vmem [resolvable:$true] %s522
          %528 = dma.hbm_to_vmem [thread:$0]  %s7, 256, %s523, [#allocation9], 64, 64, 4
        $region40: #{tpu_custom_call.1} parent=11 // pred_fallthru
          _
        // Predicated region
        $region41: #{tpu_custom_call.1} parent=11 // pred_check
          %p529 = pneg %p229
        $region42: #{tpu_custom_call.1} parent=11 // pred_check_branch
          %531 = sbr.rel (%p529) target = $region44
        $region43: #{tpu_custom_call.1} parent=11 // pred_region
          %s533 = ssub.s32 16, 16
          %534 = vsyncadd [#allocation12], %s533
          %s536 = sshll.u32 [#allocation11], 4
          %s537 = int_to_ptr.vmem [resolvable:$true] %s536
          %539 = dma.hbm_to_vmem [thread:$0]  %s8, 16, %s537, [#allocation12]
        $region44: #{tpu_custom_call.1} parent=11 // pred_fallthru
          _
        // Predicated region
        $region45: #{tpu_custom_call.1} parent=11 // pred_check
          %p540 = pneg %p250
        $region46: #{tpu_custom_call.1} parent=11 // pred_check_branch
          %542 = sbr.rel (%p540) target = $region48
        $region47: #{tpu_custom_call.1} parent=11 // pred_region
          %s544 = ssub.s32 16, 16
          %545 = vsyncadd [#allocation12], %s544
          %s547 = sshll.u32 [#allocation13], 4
          %s548 = int_to_ptr.vmem [resolvable:$true] %s547
          %550 = dma.hbm_to_vmem [thread:$0]  %s9, 16, %s548, [#allocation12]
        $region48: #{tpu_custom_call.1} parent=11 // pred_fallthru
          _
        // Predicated region
        $region49: #{tpu_custom_call.1} parent=11 // pred_check
          %p551 = pneg %p271
        $region50: #{tpu_custom_call.1} parent=11 // pred_check_branch
          %553 = sbr.rel (%p551) target = $region52
        $region51: #{tpu_custom_call.1} parent=11 // pred_region
          _
        $region52: #{tpu_custom_call.1} parent=11 // pred_fallthru
          _
        // Predicated region
        $region53: #{tpu_custom_call.1} parent=11 // pred_check
          %p554 = pneg %p292
        $region54: #{tpu_custom_call.1} parent=11 // pred_check_branch
          %556 = sbr.rel (%p554) target = $region56
        $region55: #{tpu_custom_call.1} parent=11 // pred_region
          _
        $region56: #{tpu_custom_call.1} parent=11 // pred_fallthru
          _
        // Predicated region
        $region57: #{tpu_custom_call.1} parent=11 // pred_check
          %p557 = pneg %p313
        $region58: #{tpu_custom_call.1} parent=11 // pred_check_branch
          %559 = sbr.rel (%p557) target = $region60
        $region59: #{tpu_custom_call.1} parent=11 // pred_region
          _
        $region60: #{tpu_custom_call.1} parent=11 // pred_fallthru
          _
        // Predicated region
        $region61: #{tpu_custom_call.1} parent=11 // pred_check
          %p560 = pneg %p334
        $region62: #{tpu_custom_call.1} parent=11 // pred_check_branch
          %562 = sbr.rel (%p560) target = $region64
        $region63: #{tpu_custom_call.1} parent=11 // pred_region
          _
        $region64: #{tpu_custom_call.1} parent=11 // pred_fallthru
          _
        // Predicated region
        $region65: #{tpu_custom_call.1} parent=11 // pred_check
          %p563 = pneg %p355
        $region66: #{tpu_custom_call.1} parent=11 // pred_check_branch
          %565 = sbr.rel (%p563) target = $region68
        $region67: #{tpu_custom_call.1} parent=11 // pred_region
          _
        $region68: #{tpu_custom_call.1} parent=11 // pred_fallthru
          _
        // Predicated region
        $region69: #{tpu_custom_call.1} parent=11 // pred_check
          %p566 = pneg %p376
        $region70: #{tpu_custom_call.1} parent=11 // pred_check_branch
          %568 = sbr.rel (%p566) target = $region72
        $region71: #{tpu_custom_call.1} parent=11 // pred_region
          _
        $region72: #{tpu_custom_call.1} parent=11 // pred_fallthru
          _
        // Predicated region
        $region73: #{tpu_custom_call.1} parent=11 // pred_check
          %p569 = pneg %p397
        $region74: #{tpu_custom_call.1} parent=11 // pred_check_branch
          %571 = sbr.rel (%p569) target = $region76
        $region75: #{tpu_custom_call.1} parent=11 // pred_region
          _
        $region76: #{tpu_custom_call.1} parent=11 // pred_fallthru
          _
      $region12: #{tpu_custom_call.1} parent=5 // pred_fallthru
        _
      %p572 = scmp.lt.s32.totalorder %s35, 2
      // Predicated region
      $region77: #{tpu_custom_call.1} parent=5 // pred_check
        %p573 = pneg %p572
      $region78: #{tpu_custom_call.1} parent=5 // pred_check_branch
        %575 = sbr.rel (%p573) target = $region80
      $region79: #{tpu_custom_call.1} parent=5 // pred_region
        // Predicated region
        $region81: #{tpu_custom_call.1} parent=79 // pred_check
          %p576 = pneg %p55
        $region82: #{tpu_custom_call.1} parent=79 // pred_check_branch
          %578 = sbr.rel (%p576) target = $region84
        $region83: #{tpu_custom_call.1} parent=79 // pred_region
          %p579 = scmp.lt.s32.totalorder %s35, 1
          %s580 = scalar_select %p579, %s35, 1
          %s581 = smul.addr %s580, 8
          %s582 = scalar_lea.vmem %s0, %s581
        $region84: #{tpu_custom_call.1} parent=79 // pred_fallthru
          _
      $region80: #{tpu_custom_call.1} parent=5 // pred_fallthru
        _
      %p583 = scmp.le.s32.totalorder 1, %s35
      %p584 = scmp.lt.s32.totalorder %s35, 3
      %p585 = pnand %p583, %p584
      %p586 = pneg %p585
      // Predicated region
      $region85: #{tpu_custom_call.1} parent=5 // pred_check
        _
      $region86: #{tpu_custom_call.1} parent=5 // pred_check_branch
        %588 = sbr.rel (%p585) target = $region88
      $region87: #{tpu_custom_call.1} parent=5 // pred_region
        %s589 = ssub.s32 %s35, 1
        // Predicated region
        $region89: #{tpu_custom_call.1} parent=87 // pred_check
          %p590 = pneg %p103
        $region90: #{tpu_custom_call.1} parent=87 // pred_check_branch
          %592 = sbr.rel (%p590) target = $region92
        $region91: #{tpu_custom_call.1} parent=87 // pred_region
          %593 = dma.done [#allocation3], 16
        $region92: #{tpu_custom_call.1} parent=87 // pred_fallthru
          _
        // Predicated region
        $region93: #{tpu_custom_call.1} parent=87 // pred_check
          %p594 = pneg %p145
        $region94: #{tpu_custom_call.1} parent=87 // pred_check_branch
          %596 = sbr.rel (%p594) target = $region96
        $region95: #{tpu_custom_call.1} parent=87 // pred_region
          %597 = dma.done [#allocation6], 16
        $region96: #{tpu_custom_call.1} parent=87 // pred_fallthru
          _
        // Predicated region
        $region97: #{tpu_custom_call.1} parent=87 // pred_check
          %p598 = pneg %p166
        $region98: #{tpu_custom_call.1} parent=87 // pred_check_branch
          %600 = sbr.rel (%p598) target = $region100
        $region99: #{tpu_custom_call.1} parent=87 // pred_region
          %601 = dma.done [#allocation6], 256
        $region100: #{tpu_custom_call.1} parent=87 // pred_fallthru
          _
        // Predicated region
        $region101: #{tpu_custom_call.1} parent=87 // pred_check
          %p602 = pneg %p187
        $region102: #{tpu_custom_call.1} parent=87 // pred_check_branch
          %604 = sbr.rel (%p602) target = $region104
        $region103: #{tpu_custom_call.1} parent=87 // pred_region
          %605 = dma.done [#allocation9], 16
        $region104: #{tpu_custom_call.1} parent=87 // pred_fallthru
          _
        // Predicated region
        $region105: #{tpu_custom_call.1} parent=87 // pred_check
          %p606 = pneg %p208
        $region106: #{tpu_custom_call.1} parent=87 // pred_check_branch
          %608 = sbr.rel (%p606) target = $region108
        $region107: #{tpu_custom_call.1} parent=87 // pred_region
          %609 = dma.done [#allocation9], 256
        $region108: #{tpu_custom_call.1} parent=87 // pred_fallthru
          _
        // Predicated region
        $region109: #{tpu_custom_call.1} parent=87 // pred_check
          %p610 = pneg %p229
        $region110: #{tpu_custom_call.1} parent=87 // pred_check_branch
          %612 = sbr.rel (%p610) target = $region112
        $region111: #{tpu_custom_call.1} parent=87 // pred_region
          %613 = dma.done [#allocation12], 16
        $region112: #{tpu_custom_call.1} parent=87 // pred_fallthru
          _
        // Predicated region
        $region113: #{tpu_custom_call.1} parent=87 // pred_check
          %p614 = pneg %p250
        $region114: #{tpu_custom_call.1} parent=87 // pred_check_branch
          %616 = sbr.rel (%p614) target = $region116
        $region115: #{tpu_custom_call.1} parent=87 // pred_region
          %617 = dma.done [#allocation12], 16
        $region116: #{tpu_custom_call.1} parent=87 // pred_fallthru
          _
        %p618 = scmp.lt.s32.totalorder %s40, 1
        %s619 = scalar_select %p618, %s40, 1
        %s620 = smul.addr %s619, 8
        %s621 = scalar_lea.vmem %s0, %s620
        %p622 = pneg %p61
        %p623 = pneg %p58
        %p624 = pneg %p82
        %p625 = pneg %p79
        %p626 = pneg %p103
        %p627 = pneg %p100
        %p628 = pneg %p124
        %p629 = pneg %p121
        %p630 = pneg %p145
        %p631 = pneg %p142
        %p632 = pneg %p166
        %p633 = pneg %p163
        %p634 = pneg %p187
        %p635 = pneg %p184
        %p636 = pneg %p208
        %p637 = pneg %p205
        %p638 = pneg %p229
        %p639 = pneg %p226
        %p640 = pneg %p250
        %p641 = pneg %p247
        %p642 = pneg %p271
        %p643 = pneg %p268
        %p644 = pneg %p292
        %p645 = pneg %p289
        %p646 = pneg %p313
        %p647 = pneg %p310
        %p648 = pneg %p334
        %p649 = pneg %p331
        %p650 = pneg %p355
        %p651 = pneg %p352
        %p652 = pneg %p376
        %p653 = pneg %p373
        %p654 = pneg %p397
        %p655 = pneg %p394
        %p656 = pneg %p423
        %p657 = pneg %p420
        %s658 = sand.u32 %s410, 1
        %s659 = scalar_lea.sflag [#allocation4], %s658
        %s660 = sand.u32 %s410, 1
        %s661 = smul.addr %s660, 8
        %s662 = scalar_lea.vmem [#allocation14], %s661
        %p663 = pneg %p449
        %p664 = pneg %p446
        %s665 = sand.u32 %s436, 1
        %s666 = scalar_lea.sflag [#allocation16], %s665
        %s667 = sand.u32 %s436, 1
        %s668 = smul.addr %s667, 32
        %s669 = scalar_lea.vmem [#allocation15], %s668
        %p670 = scmp.lt.s32.totalorder %s40, 1
        %s671 = scalar_select %p670, %s40, 1
        %s672 = smul.addr %s671, 8
        %s673 = scalar_lea.vmem %s0, %s672
        %v675 = vld [vmem:[%s673] sm:$0xff]
        %v676 = vpack.c.bf16 %v675, %v675
        %v677 = vld [vmem:[%s1] sm:$0xf]
        %v678 = vld [vmem:[%s1 + $0x4] sm:$0xf]
        %v679 = vld [vmem:[%s1 + $0x8] sm:$0xf]
        %v680 = vld [vmem:[%s1 + $0xc] sm:$0xf]
        %v681 = vld [vmem:[#allocation2] sm:$0x1]
        %v683 = vlaneseq
        %v684 = vshrl.u32 %v683, 7
        %v685 = vsub.s32 0, %v684
        %v686 = vrot.slane %v681, %v685
        %v692 = vunpack.c.l.b16 %v677
        %v693 = vunpack.c.l.b16 %v678
        %v694 = vunpack.c.l.b16 %v679
        %v695 = vunpack.c.l.b16 %v680
        %v696 = vpack.c.b16 %v693, %v692
        %v697 = vpack.c.b16 %v695, %v694
        %vm700 = vcmask 261120
        %v702 = vsel %vm700, %v676, 0
        %704 = vmatprep.subr.bf16.mxu0 0
        %705 = vmatpush1.bf16.msra.mxu0 0
        %706 = vmatprep.subr.bf16.mxu0 0
        %707 = vmatpush1.bf16.msra.mxu0 0
        %708 = vmatprep.subr.bf16.mxu0 0
        %709 = vmatpush1.bf16.msra.mxu0 0
        %710 = vmatprep.subr.bf16.mxu0 0
        %711 = vmatpush1.bf16.msra.mxu0 0
        %712 = vmatprep.subr.bf16.mxu0 0
        %713 = vmatpush1.bf16.msra.mxu0 0
        %714 = vmatprep.subr.bf16.mxu0 0
        %715 = vmatpush1.bf16.msra.mxu0 0
        %716 = vmatprep.subr.bf16.mxu0 0
        %717 = vmatpush1.bf16.msra.mxu0 %v697
        %718 = vmatprep.subr.bf16.mxu0 0
        %719 = vmatpush1.bf16.msra.mxu0 %v696
        %720 = vmatprep.subr.bf16.mxu0 0
        %721 = vmatpush2.bf16.msra.mxu0 0
        %722 = vmatprep.subr.bf16.mxu0 0
        %723 = vmatpush2.bf16.msra.mxu0 0
        %724 = vmatprep.subr.bf16.mxu0 0
        %725 = vmatpush2.bf16.msra.mxu0 0
        %726 = vmatprep.subr.bf16.mxu0 0
        %727 = vmatpush2.bf16.msra.mxu0 0
        %728 = vmatprep.subr.bf16.mxu0 0
        %729 = vmatpush2.bf16.msra.mxu0 0
        %730 = vmatprep.subr.bf16.mxu0 0
        %731 = vmatpush2.bf16.msra.mxu0 0
        %732 = vmatprep.subr.bf16.mxu0 0
        %733 = vmatpush2.bf16.msra.mxu0 0
        %734 = vmatprep.subr.bf16.mxu0 0
        %735 = vmatpush2.bf16.msra.mxu0 0
        %736 = vmatprep.mubr.bf16.mxu0 0
        %737 = vmatmul.mubr.bf16.gmra.mxu0 %v702
        %v738 = vpop.f32.mrf.mxu0
        %v739 = vadd.f32 %v686, %v738
        %v740 = vpop.f32.mrf.mxu0
        %v741 = vpop.f32.mrf.mxu0
        %v742 = vpop.f32.mrf.mxu0
        %743 = vdwg.mxu0
        %v744 = vld [vmem:[%s3] sm:$0xf]
        %v745 = vld [vmem:[%s3 + $0x4] sm:$0xf]
        %v746 = vld [vmem:[%s3 + $0x8] sm:$0xf]
        %v747 = vld [vmem:[%s3 + $0xc] sm:$0xf]
        %v748 = vld [vmem:[#allocation5] sm:$0x1]
        %v750 = vlaneseq
        %v751 = vshrl.u32 %v750, 7
        %v752 = vsub.s32 0, %v751
        %v753 = vrot.slane %v748, %v752
        %v759 = vunpack.c.l.b16 %v744
        %v760 = vunpack.c.l.b16 %v745
        %v761 = vunpack.c.l.b16 %v746
        %v762 = vunpack.c.l.b16 %v747
        %v763 = vpack.c.b16 %v760, %v759
        %v764 = vpack.c.b16 %v762, %v761
        %767 = vmatprep.subr.bf16.mxu0 0
        %768 = vmatpush1.bf16.msra.mxu0 0
        %769 = vmatprep.subr.bf16.mxu0 0
        %770 = vmatpush1.bf16.msra.mxu0 0
        %771 = vmatprep.subr.bf16.mxu0 0
        %772 = vmatpush1.bf16.msra.mxu0 0
        %773 = vmatprep.subr.bf16.mxu0 0
        %774 = vmatpush1.bf16.msra.mxu0 0
        %775 = vmatprep.subr.bf16.mxu0 0
        %776 = vmatpush1.bf16.msra.mxu0 0
        %777 = vmatprep.subr.bf16.mxu0 0
        %778 = vmatpush1.bf16.msra.mxu0 0
        %779 = vmatprep.subr.bf16.mxu0 0
        %780 = vmatpush1.bf16.msra.mxu0 %v764
        %781 = vmatprep.subr.bf16.mxu0 0
        %782 = vmatpush1.bf16.msra.mxu0 %v763
        %783 = vmatprep.subr.bf16.mxu0 0
        %784 = vmatpush2.bf16.msra.mxu0 0
        %785 = vmatprep.subr.bf16.mxu0 0
        %786 = vmatpush2.bf16.msra.mxu0 0
        %787 = vmatprep.subr.bf16.mxu0 0
        %788 = vmatpush2.bf16.msra.mxu0 0
        %789 = vmatprep.subr.bf16.mxu0 0
        %790 = vmatpush2.bf16.msra.mxu0 0
        %791 = vmatprep.subr.bf16.mxu0 0
        %792 = vmatpush2.bf16.msra.mxu0 0
        %793 = vmatprep.subr.bf16.mxu0 0
        %794 = vmatpush2.bf16.msra.mxu0 0
        %795 = vmatprep.subr.bf16.mxu0 0
        %796 = vmatpush2.bf16.msra.mxu0 0
        %797 = vmatprep.subr.bf16.mxu0 0
        %798 = vmatpush2.bf16.msra.mxu0 0
        %799 = vmatprep.mubr.bf16.mxu0 0
        %800 = vmatmul.mubr.bf16.gmra.mxu0 %v702
        %v801 = vpop.f32.mrf.mxu0
        %v802 = vadd.f32 %v753, %v801
        %v803 = vpop.f32.mrf.mxu0
        %v804 = vpop.f32.mrf.mxu0
        %v805 = vpop.f32.mrf.mxu0
        %806 = vdwg.mxu0
        %v807 = vld [vmem:[#allocation7] sm:$0xf]
        %v808 = vld [vmem:[#allocation7 + $0x4] sm:$0xf]
        %v809 = vld [vmem:[#allocation7 + $0x8] sm:$0xf]
        %v810 = vld [vmem:[#allocation7 + $0xc] sm:$0xf]
        %v811 = vld [vmem:[#allocation8] sm:$0x1]
        %v813 = vlaneseq
        %v814 = vshrl.u32 %v813, 7
        %v815 = vsub.s32 0, %v814
        %v816 = vrot.slane %v811, %v815
        %v822 = vunpack.c.l.b16 %v807
        %v823 = vunpack.c.l.b16 %v808
        %v824 = vunpack.c.l.b16 %v809
        %v825 = vunpack.c.l.b16 %v810
        %v826 = vpack.c.b16 %v823, %v822
        %v827 = vpack.c.b16 %v825, %v824
        %830 = vmatprep.subr.bf16.mxu0 0
        %831 = vmatpush1.bf16.msra.mxu0 0
        %832 = vmatprep.subr.bf16.mxu0 0
        %833 = vmatpush1.bf16.msra.mxu0 0
        %834 = vmatprep.subr.bf16.mxu0 0
        %835 = vmatpush1.bf16.msra.mxu0 0
        %836 = vmatprep.subr.bf16.mxu0 0
        %837 = vmatpush1.bf16.msra.mxu0 0
        %838 = vmatprep.subr.bf16.mxu0 0
        %839 = vmatpush1.bf16.msra.mxu0 0
        %840 = vmatprep.subr.bf16.mxu0 0
        %841 = vmatpush1.bf16.msra.mxu0 0
        %842 = vmatprep.subr.bf16.mxu0 0
        %843 = vmatpush1.bf16.msra.mxu0 %v827
        %844 = vmatprep.subr.bf16.mxu0 0
        %845 = vmatpush1.bf16.msra.mxu0 %v826
        %846 = vmatprep.subr.bf16.mxu0 0
        %847 = vmatpush2.bf16.msra.mxu0 0
        %848 = vmatprep.subr.bf16.mxu0 0
        %849 = vmatpush2.bf16.msra.mxu0 0
        %850 = vmatprep.subr.bf16.mxu0 0
        %851 = vmatpush2.bf16.msra.mxu0 0
        %852 = vmatprep.subr.bf16.mxu0 0
        %853 = vmatpush2.bf16.msra.mxu0 0
        %854 = vmatprep.subr.bf16.mxu0 0
        %855 = vmatpush2.bf16.msra.mxu0 0
        %856 = vmatprep.subr.bf16.mxu0 0
        %857 = vmatpush2.bf16.msra.mxu0 0
        %858 = vmatprep.subr.bf16.mxu0 0
        %859 = vmatpush2.bf16.msra.mxu0 0
        %860 = vmatprep.subr.bf16.mxu0 0
        %861 = vmatpush2.bf16.msra.mxu0 0
        %862 = vmatprep.mubr.bf16.mxu0 0
        %863 = vmatmul.mubr.bf16.gmra.mxu0 %v702
        %v864 = vpop.f32.mrf.mxu0
        %v865 = vadd.f32 %v816, %v864
        %v866 = vpop.f32.mrf.mxu0
        %v867 = vpop.f32.mrf.mxu0
        %v868 = vpop.f32.mrf.mxu0
        %869 = vdwg.mxu0
        %v870 = vmul.f32 %v739, 0.35355338
        %v871 = vld [vmem:[#allocation10] sm:$0xf]
        %v872 = vld [vmem:[#allocation10 + $0x4] sm:$0xf]
        %v873 = vld [vmem:[#allocation10 + $0x8] sm:$0xf]
        %v874 = vld [vmem:[#allocation10 + $0xc] sm:$0xf]
        %v875 = vpack.c.bf16 %v870, %v870
        %v876 = vpack.c.bf16 %v802, %v802
        %v877 = vpack.c.bf16 %v865, %v865
        %vm878 = vcmask 64512
        %v880 = vsel %vm878, %v875, 0
        %v883 = vsel %vm878, %v876, 0
        %885 = vmatprep.subr.bf16.mxu0 0
        %886 = vmatpush1.bf16.xpose.msra.mxu0 0
        %887 = vmatprep.subr.bf16.mxu0 0
        %888 = vmatpush1.bf16.xpose.msra.mxu0 0
        %889 = vmatprep.subr.bf16.mxu0 0
        %890 = vmatpush1.bf16.xpose.msra.mxu0 0
        %891 = vmatprep.subr.bf16.mxu0 0
        %892 = vmatpush1.bf16.xpose.msra.mxu0 0
        %893 = vmatprep.subr.bf16.mxu0 0
        %894 = vmatpush1.bf16.xpose.msra.mxu0 0
        %895 = vmatprep.subr.bf16.mxu0 0
        %896 = vmatpush1.bf16.xpose.msra.mxu0 0
        %897 = vmatprep.subr.bf16.mxu0 0
        %898 = vmatpush1.bf16.xpose.msra.mxu0 0
        %899 = vmatprep.subr.bf16.mxu0 0
        %900 = vmatpush1.bf16.xpose.msra.mxu0 %v883
        %901 = vmatprep.subr.bf16.mxu0 0
        %902 = vmatpush2.bf16.xpose.msra.mxu0 0
        %903 = vmatprep.subr.bf16.mxu0 0
        %904 = vmatpush2.bf16.xpose.msra.mxu0 0
        %905 = vmatprep.subr.bf16.mxu0 0
        %906 = vmatpush2.bf16.xpose.msra.mxu0 0
        %907 = vmatprep.subr.bf16.mxu0 0
        %908 = vmatpush2.bf16.xpose.msra.mxu0 0
        %909 = vmatprep.subr.bf16.mxu0 0
        %910 = vmatpush2.bf16.xpose.msra.mxu0 0
        %911 = vmatprep.subr.bf16.mxu0 0
        %912 = vmatpush2.bf16.xpose.msra.mxu0 0
        %913 = vmatprep.subr.bf16.mxu0 0
        %914 = vmatpush2.bf16.xpose.msra.mxu0 0
        %915 = vmatprep.subr.bf16.mxu0 0
        %916 = vmatpush2.bf16.xpose.msra.mxu0 0
        %917 = vmatprep.mubr.bf16.mxu0 0
        %918 = vmatmul.mubr.bf16.gmra.mxu0 %v880
        %v919 = vpop.f32.mrf.mxu0
        %v920 = vadd.f32 0.0, %v919
        %v921 = vpop.f32.mrf.mxu0
        %v922 = vpop.f32.mrf.mxu0
        %v923 = vpop.f32.mrf.mxu0
        %924 = vdwg.mxu0
        %v925 = vsel %vm878, %v920, -inf
        %926 = vmax.xlane.f32.xlu0 %v925
        %v927 = vpop.xlane.xlu0 %926
        %v928 = vsub.f32 %v920, %v927
        %v929 = vmul.f32 %v928, 1.442695
        %v930 = vpow.pop %v929
        %v931 = vsel %vm878, %v930, 0.0
        %932 = vadd.xlane.f32.xlu0 %v931
        %v933 = vpop.xlane.xlu0 %932
        %v934 = vrcp.pop %v933
        %v935 = vmul.f32 %v930, %v934
        %936 = vst.msk [vmem:[%s669] sm:$0xff] %vm878, %v935
        %v937 = vpack.c.bf16 %v935, %v935
        %v939 = vsel %vm878, %v937, 0
        %vm941 = vcmask 1043456
        %v943 = vsel %vm941, %v877, 0
        %945 = vmatprep.subr.bf16.mxu0 0
        %946 = vmatpush1.bf16.msra.mxu0 0
        %947 = vmatprep.subr.bf16.mxu0 0
        %948 = vmatpush1.bf16.msra.mxu0 0
        %949 = vmatprep.subr.bf16.mxu0 0
        %950 = vmatpush1.bf16.msra.mxu0 0
        %951 = vmatprep.subr.bf16.mxu0 0
        %952 = vmatpush1.bf16.msra.mxu0 0
        %953 = vmatprep.subr.bf16.mxu0 0
        %954 = vmatpush1.bf16.msra.mxu0 0
        %955 = vmatprep.subr.bf16.mxu0 0
        %956 = vmatpush1.bf16.msra.mxu0 0
        %957 = vmatprep.subr.bf16.mxu0 0
        %958 = vmatpush1.bf16.msra.mxu0 0
        %959 = vmatprep.subr.bf16.mxu0 0
        %960 = vmatpush1.bf16.msra.mxu0 %v943
        %961 = vmatprep.subr.bf16.mxu0 0
        %962 = vmatpush2.bf16.msra.mxu0 0
        %963 = vmatprep.subr.bf16.mxu0 0
        %964 = vmatpush2.bf16.msra.mxu0 0
        %965 = vmatprep.subr.bf16.mxu0 0
        %966 = vmatpush2.bf16.msra.mxu0 0
        %967 = vmatprep.subr.bf16.mxu0 0
        %968 = vmatpush2.bf16.msra.mxu0 0
        %969 = vmatprep.subr.bf16.mxu0 0
        %970 = vmatpush2.bf16.msra.mxu0 0
        %971 = vmatprep.subr.bf16.mxu0 0
        %972 = vmatpush2.bf16.msra.mxu0 0
        %973 = vmatprep.subr.bf16.mxu0 0
        %974 = vmatpush2.bf16.msra.mxu0 0
        %975 = vmatprep.subr.bf16.mxu0 0
        %976 = vmatpush2.bf16.msra.mxu0 0
        %977 = vmatprep.mubr.bf16.mxu0 0
        %978 = vmatmul.mubr.bf16.gmra.mxu0 %v939
        %v979 = vpop.f32.mrf.mxu0
        %v980 = vadd.f32 0.0, %v979
        %v981 = vpop.f32.mrf.mxu0
        %v982 = vpop.f32.mrf.mxu0
        %v983 = vpop.f32.mrf.mxu0
        %984 = vdwg.mxu0
        %v985 = vpack.c.bf16 %v980, %v980
        %987 = vrot.lane.b32.xlu0 %v875, 120
        %v988 = vpop.permute.xlu0 %987
        %990 = vrot.lane.b32.xlu0 %v876, 120
        %v991 = vpop.permute.xlu0 %990
        %v993 = vsel %vm878, %v988, 0
        %v996 = vsel %vm878, %v991, 0
        %998 = vmatprep.subr.bf16.mxu0 0
        %999 = vmatpush1.bf16.xpose.msra.mxu0 0
        %1000 = vmatprep.subr.bf16.mxu0 0
        %1001 = vmatpush1.bf16.xpose.msra.mxu0 0
        %1002 = vmatprep.subr.bf16.mxu0 0
        %1003 = vmatpush1.bf16.xpose.msra.mxu0 0
        %1004 = vmatprep.subr.bf16.mxu0 0
        %1005 = vmatpush1.bf16.xpose.msra.mxu0 0
        %1006 = vmatprep.subr.bf16.mxu0 0
        %1007 = vmatpush1.bf16.xpose.msra.mxu0 0
        %1008 = vmatprep.subr.bf16.mxu0 0
        %1009 = vmatpush1.bf16.xpose.msra.mxu0 0
        %1010 = vmatprep.subr.bf16.mxu0 0
        %1011 = vmatpush1.bf16.xpose.msra.mxu0 0
        %1012 = vmatprep.subr.bf16.mxu0 0
        %1013 = vmatpush1.bf16.xpose.msra.mxu0 %v996
        %1014 = vmatprep.subr.bf16.mxu0 0
        %1015 = vmatpush2.bf16.xpose.msra.mxu0 0
        %1016 = vmatprep.subr.bf16.mxu0 0
        %1017 = vmatpush2.bf16.xpose.msra.mxu0 0
        %1018 = vmatprep.subr.bf16.mxu0 0
        %1019 = vmatpush2.bf16.xpose.msra.mxu0 0
        %1020 = vmatprep.subr.bf16.mxu0 0
        %1021 = vmatpush2.bf16.xpose.msra.mxu0 0
        %1022 = vmatprep.subr.bf16.mxu0 0
        %1023 = vmatpush2.bf16.xpose.msra.mxu0 0
        %1024 = vmatprep.subr.bf16.mxu0 0
        %1025 = vmatpush2.bf16.xpose.msra.mxu0 0
        %1026 = vmatprep.subr.bf16.mxu0 0
        %1027 = vmatpush2.bf16.xpose.msra.mxu0 0
        %1028 = vmatprep.subr.bf16.mxu0 0
        %1029 = vmatpush2.bf16.xpose.msra.mxu0 0
        %1030 = vmatprep.mubr.bf16.mxu0 0
        %1031 = vmatmul.mubr.bf16.gmra.mxu0 %v993
        %v1032 = vpop.f32.mrf.mxu0
        %v1033 = vadd.f32 0.0, %v1032
        %v1034 = vpop.f32.mrf.mxu0
        %v1035 = vpop.f32.mrf.mxu0
        %v1036 = vpop.f32.mrf.mxu0
        %1037 = vdwg.mxu0
        %v1038 = vsel %vm878, %v1033, -inf
        %1039 = vmax.xlane.f32.xlu0 %v1038
        %v1040 = vpop.xlane.xlu0 %1039
        %v1041 = vsub.f32 %v1033, %v1040
        %v1042 = vmul.f32 %v1041, 1.442695
        %v1043 = vpow.pop %v1042
        %v1044 = vsel %vm878, %v1043, 0.0
        %1045 = vadd.xlane.f32.xlu0 %v1044
        %v1046 = vpop.xlane.xlu0 %1045
        %v1047 = vrcp.pop %v1046
        %v1048 = vmul.f32 %v1043, %v1047
        %s1049 = scalar_lea.vmem %s669, 8 [#allocation15]
        %1050 = vst.msk [vmem:[%s1049] sm:$0xff] %vm878, %v1048
        %v1051 = vpack.c.bf16 %v1048, %v1048
        %1053 = vrot.lane.b32.xlu0 %v877, 120
        %v1054 = vpop.permute.xlu0 %1053
        %v1056 = vsel %vm878, %v1051, 0
        %v1059 = vsel %vm941, %v1054, 0
        %1061 = vmatprep.subr.bf16.mxu0 0
        %1062 = vmatpush1.bf16.msra.mxu0 0
        %1063 = vmatprep.subr.bf16.mxu0 0
        %1064 = vmatpush1.bf16.msra.mxu0 0
        %1065 = vmatprep.subr.bf16.mxu0 0
        %1066 = vmatpush1.bf16.msra.mxu0 0
        %1067 = vmatprep.subr.bf16.mxu0 0
        %1068 = vmatpush1.bf16.msra.mxu0 0
        %1069 = vmatprep.subr.bf16.mxu0 0
        %1070 = vmatpush1.bf16.msra.mxu0 0
        %1071 = vmatprep.subr.bf16.mxu0 0
        %1072 = vmatpush1.bf16.msra.mxu0 0
        %1073 = vmatprep.subr.bf16.mxu0 0
        %1074 = vmatpush1.bf16.msra.mxu0 0
        %1075 = vmatprep.subr.bf16.mxu0 0
        %1076 = vmatpush1.bf16.msra.mxu0 %v1059
        %1077 = vmatprep.subr.bf16.mxu0 0
        %1078 = vmatpush2.bf16.msra.mxu0 0
        %1079 = vmatprep.subr.bf16.mxu0 0
        %1080 = vmatpush2.bf16.msra.mxu0 0
        %1081 = vmatprep.subr.bf16.mxu0 0
        %1082 = vmatpush2.bf16.msra.mxu0 0
        %1083 = vmatprep.subr.bf16.mxu0 0
        %1084 = vmatpush2.bf16.msra.mxu0 0
        %1085 = vmatprep.subr.bf16.mxu0 0
        %1086 = vmatpush2.bf16.msra.mxu0 0
        %1087 = vmatprep.subr.bf16.mxu0 0
        %1088 = vmatpush2.bf16.msra.mxu0 0
        %1089 = vmatprep.subr.bf16.mxu0 0
        %1090 = vmatpush2.bf16.msra.mxu0 0
        %1091 = vmatprep.subr.bf16.mxu0 0
        %1092 = vmatpush2.bf16.msra.mxu0 0
        %1093 = vmatprep.mubr.bf16.mxu0 0
        %1094 = vmatmul.mubr.bf16.gmra.mxu0 %v1056
        %v1095 = vpop.f32.mrf.mxu0
        %v1096 = vadd.f32 0.0, %v1095
        %v1097 = vpop.f32.mrf.mxu0
        %v1098 = vpop.f32.mrf.mxu0
        %v1099 = vpop.f32.mrf.mxu0
        %1100 = vdwg.mxu0
        %v1101 = vpack.c.bf16 %v1096, %v1096
        %v1103 = vsel %vm878, %v1101, 0
        %v1106 = vsel %vm941, %v872, 0
        %1108 = vmatprep.subr.bf16.mxu0 0
        %1109 = vmatpush1.bf16.msra.mxu0 0
        %1110 = vmatprep.subr.bf16.mxu0 0
        %1111 = vmatpush1.bf16.msra.mxu0 0
        %1112 = vmatprep.subr.bf16.mxu0 0
        %1113 = vmatpush1.bf16.msra.mxu0 0
        %1114 = vmatprep.subr.bf16.mxu0 0
        %1115 = vmatpush1.bf16.msra.mxu0 0
        %1116 = vmatprep.subr.bf16.mxu0 0
        %1117 = vmatpush1.bf16.msra.mxu0 0
        %1118 = vmatprep.subr.bf16.mxu0 0
        %1119 = vmatpush1.bf16.msra.mxu0 0
        %1120 = vmatprep.subr.bf16.mxu0 0
        %1121 = vmatpush1.bf16.msra.mxu0 0
        %1122 = vmatprep.subr.bf16.mxu0 0
        %1123 = vmatpush1.bf16.msra.mxu0 %v1106
        %1124 = vmatprep.subr.bf16.mxu0 0
        %1125 = vmatpush2.bf16.msra.mxu0 0
        %1126 = vmatprep.subr.bf16.mxu0 0
        %1127 = vmatpush2.bf16.msra.mxu0 0
        %1128 = vmatprep.subr.bf16.mxu0 0
        %1129 = vmatpush2.bf16.msra.mxu0 0
        %1130 = vmatprep.subr.bf16.mxu0 0
        %1131 = vmatpush2.bf16.msra.mxu0 0
        %1132 = vmatprep.subr.bf16.mxu0 0
        %1133 = vmatpush2.bf16.msra.mxu0 0
        %1134 = vmatprep.subr.bf16.mxu0 0
        %1135 = vmatpush2.bf16.msra.mxu0 0
        %1136 = vmatprep.subr.bf16.mxu0 0
        %1137 = vmatpush2.bf16.msra.mxu0 0
        %1138 = vmatprep.subr.bf16.mxu0 0
        %1139 = vmatpush2.bf16.msra.mxu0 0
        %1140 = vmatprep.mubr.bf16.mxu0 0
        %1141 = vmatmul.mubr.bf16.gmra.mxu0 %v1103
        %v1142 = vpop.f32.mrf.mxu0
        %v1143 = vadd.f32 0.0, %v1142
        %v1144 = vpop.f32.mrf.mxu0
        %v1145 = vpop.f32.mrf.mxu0
        %v1146 = vpop.f32.mrf.mxu0
        %1147 = vdwg.mxu0
        %v1149 = vsel %vm878, %v985, 0
        %v1152 = vsel %vm941, %v871, 0
        %1154 = vmatprep.subr.bf16.mxu0 0
        %1155 = vmatpush1.bf16.msra.mxu0 0
        %1156 = vmatprep.subr.bf16.mxu0 0
        %1157 = vmatpush1.bf16.msra.mxu0 0
        %1158 = vmatprep.subr.bf16.mxu0 0
        %1159 = vmatpush1.bf16.msra.mxu0 0
        %1160 = vmatprep.subr.bf16.mxu0 0
        %1161 = vmatpush1.bf16.msra.mxu0 0
        %1162 = vmatprep.subr.bf16.mxu0 0
        %1163 = vmatpush1.bf16.msra.mxu0 0
        %1164 = vmatprep.subr.bf16.mxu0 0
        %1165 = vmatpush1.bf16.msra.mxu0 0
        %1166 = vmatprep.subr.bf16.mxu0 0
        %1167 = vmatpush1.bf16.msra.mxu0 0
        %1168 = vmatprep.subr.bf16.mxu0 0
        %1169 = vmatpush1.bf16.msra.mxu0 %v1152
        %1170 = vmatprep.subr.bf16.mxu0 0
        %1171 = vmatpush2.bf16.msra.mxu0 0
        %1172 = vmatprep.subr.bf16.mxu0 0
        %1173 = vmatpush2.bf16.msra.mxu0 0
        %1174 = vmatprep.subr.bf16.mxu0 0
        %1175 = vmatpush2.bf16.msra.mxu0 0
        %1176 = vmatprep.subr.bf16.mxu0 0
        %1177 = vmatpush2.bf16.msra.mxu0 0
        %1178 = vmatprep.subr.bf16.mxu0 0
        %1179 = vmatpush2.bf16.msra.mxu0 0
        %1180 = vmatprep.subr.bf16.mxu0 0
        %1181 = vmatpush2.bf16.msra.mxu0 0
        %1182 = vmatprep.subr.bf16.mxu0 0
        %1183 = vmatpush2.bf16.msra.mxu0 0
        %1184 = vmatprep.subr.bf16.mxu0 0
        %1185 = vmatpush2.bf16.msra.mxu0 0
        %1186 = vmatprep.mubr.bf16.mxu0 0
        %1187 = vmatmul.mubr.bf16.gmra.mxu0 %v1149
        %v1188 = vpop.f32.mrf.mxu0
        %v1189 = vadd.f32 %v1143, %v1188
        %v1190 = vpop.f32.mrf.mxu0
        %v1191 = vpop.f32.mrf.mxu0
        %v1192 = vpop.f32.mrf.mxu0
        %1193 = vdwg.mxu0
        %1194 = vrot.lane.b32.xlu0 %v875, 112
        %v1195 = vpop.permute.xlu0 %1194
        %1196 = vrot.lane.b32.xlu0 %v876, 112
        %v1197 = vpop.permute.xlu0 %1196
        %v1199 = vsel %vm878, %v1195, 0
        %v1202 = vsel %vm878, %v1197, 0
        %1204 = vmatprep.subr.bf16.mxu0 0
        %1205 = vmatpush1.bf16.xpose.msra.mxu0 0
        %1206 = vmatprep.subr.bf16.mxu0 0
        %1207 = vmatpush1.bf16.xpose.msra.mxu0 0
        %1208 = vmatprep.subr.bf16.mxu0 0
        %1209 = vmatpush1.bf16.xpose.msra.mxu0 0
        %1210 = vmatprep.subr.bf16.mxu0 0
        %1211 = vmatpush1.bf16.xpose.msra.mxu0 0
        %1212 = vmatprep.subr.bf16.mxu0 0
        %1213 = vmatpush1.bf16.xpose.msra.mxu0 0
        %1214 = vmatprep.subr.bf16.mxu0 0
        %1215 = vmatpush1.bf16.xpose.msra.mxu0 0
        %1216 = vmatprep.subr.bf16.mxu0 0
        %1217 = vmatpush1.bf16.xpose.msra.mxu0 0
        %1218 = vmatprep.subr.bf16.mxu0 0
        %1219 = vmatpush1.bf16.xpose.msra.mxu0 %v1202
        %1220 = vmatprep.subr.bf16.mxu0 0
        %1221 = vmatpush2.bf16.xpose.msra.mxu0 0
        %1222 = vmatprep.subr.bf16.mxu0 0
        %1223 = vmatpush2.bf16.xpose.msra.mxu0 0
        %1224 = vmatprep.subr.bf16.mxu0 0
        %1225 = vmatpush2.bf16.xpose.msra.mxu0 0
        %1226 = vmatprep.subr.bf16.mxu0 0
        %1227 = vmatpush2.bf16.xpose.msra.mxu0 0
        %1228 = vmatprep.subr.bf16.mxu0 0
        %1229 = vmatpush2.bf16.xpose.msra.mxu0 0
        %1230 = vmatprep.subr.bf16.mxu0 0
        %1231 = vmatpush2.bf16.xpose.msra.mxu0 0
        %1232 = vmatprep.subr.bf16.mxu0 0
        %1233 = vmatpush2.bf16.xpose.msra.mxu0 0
        %1234 = vmatprep.subr.bf16.mxu0 0
        %1235 = vmatpush2.bf16.xpose.msra.mxu0 0
        %1236 = vmatprep.mubr.bf16.mxu0 0
        %1237 = vmatmul.mubr.bf16.gmra.mxu0 %v1199
        %v1238 = vpop.f32.mrf.mxu0
        %v1239 = vadd.f32 0.0, %v1238
        %v1240 = vpop.f32.mrf.mxu0
        %v1241 = vpop.f32.mrf.mxu0
        %v1242 = vpop.f32.mrf.mxu0
        %1243 = vdwg.mxu0
        %v1244 = vsel %vm878, %v1239, -inf
        %1245 = vmax.xlane.f32.xlu0 %v1244
        %v1246 = vpop.xlane.xlu0 %1245
        %v1247 = vsub.f32 %v1239, %v1246
        %v1248 = vmul.f32 %v1247, 1.442695
        %v1249 = vpow.pop %v1248
        %v1250 = vsel %vm878, %v1249, 0.0
        %1251 = vadd.xlane.f32.xlu0 %v1250
        %v1252 = vpop.xlane.xlu0 %1251
        %v1253 = vrcp.pop %v1252
        %v1254 = vmul.f32 %v1249, %v1253
        %s1255 = scalar_lea.vmem %s669, 16 [#allocation15]
        %1256 = vst.msk [vmem:[%s1255] sm:$0xff] %vm878, %v1254
        %v1257 = vpack.c.bf16 %v1254, %v1254
        %1258 = vrot.lane.b32.xlu0 %v877, 112
        %v1259 = vpop.permute.xlu0 %1258
        %v1261 = vsel %vm878, %v1257, 0
        %v1264 = vsel %vm941, %v1259, 0
        %1266 = vmatprep.subr.bf16.mxu0 0
        %1267 = vmatpush1.bf16.msra.mxu0 0
        %1268 = vmatprep.subr.bf16.mxu0 0
        %1269 = vmatpush1.bf16.msra.mxu0 0
        %1270 = vmatprep.subr.bf16.mxu0 0
        %1271 = vmatpush1.bf16.msra.mxu0 0
        %1272 = vmatprep.subr.bf16.mxu0 0
        %1273 = vmatpush1.bf16.msra.mxu0 0
        %1274 = vmatprep.subr.bf16.mxu0 0
        %1275 = vmatpush1.bf16.msra.mxu0 0
        %1276 = vmatprep.subr.bf16.mxu0 0
        %1277 = vmatpush1.bf16.msra.mxu0 0
        %1278 = vmatprep.subr.bf16.mxu0 0
        %1279 = vmatpush1.bf16.msra.mxu0 0
        %1280 = vmatprep.subr.bf16.mxu0 0
        %1281 = vmatpush1.bf16.msra.mxu0 %v1264
        %1282 = vmatprep.subr.bf16.mxu0 0
        %1283 = vmatpush2.bf16.msra.mxu0 0
        %1284 = vmatprep.subr.bf16.mxu0 0
        %1285 = vmatpush2.bf16.msra.mxu0 0
        %1286 = vmatprep.subr.bf16.mxu0 0
        %1287 = vmatpush2.bf16.msra.mxu0 0
        %1288 = vmatprep.subr.bf16.mxu0 0
        %1289 = vmatpush2.bf16.msra.mxu0 0
        %1290 = vmatprep.subr.bf16.mxu0 0
        %1291 = vmatpush2.bf16.msra.mxu0 0
        %1292 = vmatprep.subr.bf16.mxu0 0
        %1293 = vmatpush2.bf16.msra.mxu0 0
        %1294 = vmatprep.subr.bf16.mxu0 0
        %1295 = vmatpush2.bf16.msra.mxu0 0
        %1296 = vmatprep.subr.bf16.mxu0 0
        %1297 = vmatpush2.bf16.msra.mxu0 0
        %1298 = vmatprep.mubr.bf16.mxu0 0
        %1299 = vmatmul.mubr.bf16.gmra.mxu0 %v1261
        %v1300 = vpop.f32.mrf.mxu0
        %v1301 = vadd.f32 0.0, %v1300
        %v1302 = vpop.f32.mrf.mxu0
        %v1303 = vpop.f32.mrf.mxu0
        %v1304 = vpop.f32.mrf.mxu0
        %1305 = vdwg.mxu0
        %v1306 = vpack.c.bf16 %v1301, %v1301
        %v1308 = vsel %vm878, %v1306, 0
        %v1311 = vsel %vm941, %v873, 0
        %1313 = vmatprep.subr.bf16.mxu0 0
        %1314 = vmatpush1.bf16.msra.mxu0 0
        %1315 = vmatprep.subr.bf16.mxu0 0
        %1316 = vmatpush1.bf16.msra.mxu0 0
        %1317 = vmatprep.subr.bf16.mxu0 0
        %1318 = vmatpush1.bf16.msra.mxu0 0
        %1319 = vmatprep.subr.bf16.mxu0 0
        %1320 = vmatpush1.bf16.msra.mxu0 0
        %1321 = vmatprep.subr.bf16.mxu0 0
        %1322 = vmatpush1.bf16.msra.mxu0 0
        %1323 = vmatprep.subr.bf16.mxu0 0
        %1324 = vmatpush1.bf16.msra.mxu0 0
        %1325 = vmatprep.subr.bf16.mxu0 0
        %1326 = vmatpush1.bf16.msra.mxu0 0
        %1327 = vmatprep.subr.bf16.mxu0 0
        %1328 = vmatpush1.bf16.msra.mxu0 %v1311
        %1329 = vmatprep.subr.bf16.mxu0 0
        %1330 = vmatpush2.bf16.msra.mxu0 0
        %1331 = vmatprep.subr.bf16.mxu0 0
        %1332 = vmatpush2.bf16.msra.mxu0 0
        %1333 = vmatprep.subr.bf16.mxu0 0
        %1334 = vmatpush2.bf16.msra.mxu0 0
        %1335 = vmatprep.subr.bf16.mxu0 0
        %1336 = vmatpush2.bf16.msra.mxu0 0
        %1337 = vmatprep.subr.bf16.mxu0 0
        %1338 = vmatpush2.bf16.msra.mxu0 0
        %1339 = vmatprep.subr.bf16.mxu0 0
        %1340 = vmatpush2.bf16.msra.mxu0 0
        %1341 = vmatprep.subr.bf16.mxu0 0
        %1342 = vmatpush2.bf16.msra.mxu0 0
        %1343 = vmatprep.subr.bf16.mxu0 0
        %1344 = vmatpush2.bf16.msra.mxu0 0
        %1345 = vmatprep.mubr.bf16.mxu0 0
        %1346 = vmatmul.mubr.bf16.gmra.mxu0 %v1308
        %v1347 = vpop.f32.mrf.mxu0
        %v1348 = vadd.f32 0.0, %v1347
        %v1349 = vpop.f32.mrf.mxu0
        %v1350 = vpop.f32.mrf.mxu0
        %v1351 = vpop.f32.mrf.mxu0
        %1352 = vdwg.mxu0
        %v1353 = vadd.f32 %v1189, %v1348
        %1354 = vrot.lane.b32.xlu0 %v875, 104
        %v1355 = vpop.permute.xlu0 %1354
        %1356 = vrot.lane.b32.xlu0 %v876, 104
        %v1357 = vpop.permute.xlu0 %1356
        %v1359 = vsel %vm878, %v1355, 0
        %v1362 = vsel %vm878, %v1357, 0
        %1364 = vmatprep.subr.bf16.mxu0 0
        %1365 = vmatpush1.bf16.xpose.msra.mxu0 0
        %1366 = vmatprep.subr.bf16.mxu0 0
        %1367 = vmatpush1.bf16.xpose.msra.mxu0 0
        %1368 = vmatprep.subr.bf16.mxu0 0
        %1369 = vmatpush1.bf16.xpose.msra.mxu0 0
        %1370 = vmatprep.subr.bf16.mxu0 0
        %1371 = vmatpush1.bf16.xpose.msra.mxu0 0
        %1372 = vmatprep.subr.bf16.mxu0 0
        %1373 = vmatpush1.bf16.xpose.msra.mxu0 0
        %1374 = vmatprep.subr.bf16.mxu0 0
        %1375 = vmatpush1.bf16.xpose.msra.mxu0 0
        %1376 = vmatprep.subr.bf16.mxu0 0
        %1377 = vmatpush1.bf16.xpose.msra.mxu0 0
        %1378 = vmatprep.subr.bf16.mxu0 0
        %1379 = vmatpush1.bf16.xpose.msra.mxu0 %v1362
        %1380 = vmatprep.subr.bf16.mxu0 0
        %1381 = vmatpush2.bf16.xpose.msra.mxu0 0
        %1382 = vmatprep.subr.bf16.mxu0 0
        %1383 = vmatpush2.bf16.xpose.msra.mxu0 0
        %1384 = vmatprep.subr.bf16.mxu0 0
        %1385 = vmatpush2.bf16.xpose.msra.mxu0 0
        %1386 = vmatprep.subr.bf16.mxu0 0
        %1387 = vmatpush2.bf16.xpose.msra.mxu0 0
        %1388 = vmatprep.subr.bf16.mxu0 0
        %1389 = vmatpush2.bf16.xpose.msra.mxu0 0
        %1390 = vmatprep.subr.bf16.mxu0 0
        %1391 = vmatpush2.bf16.xpose.msra.mxu0 0
        %1392 = vmatprep.subr.bf16.mxu0 0
        %1393 = vmatpush2.bf16.xpose.msra.mxu0 0
        %1394 = vmatprep.subr.bf16.mxu0 0
        %1395 = vmatpush2.bf16.xpose.msra.mxu0 0
        %1396 = vmatprep.mubr.bf16.mxu0 0
        %1397 = vmatmul.mubr.bf16.gmra.mxu0 %v1359
        %v1398 = vpop.f32.mrf.mxu0
        %v1399 = vadd.f32 0.0, %v1398
        %v1400 = vpop.f32.mrf.mxu0
        %v1401 = vpop.f32.mrf.mxu0
        %v1402 = vpop.f32.mrf.mxu0
        %1403 = vdwg.mxu0
        %v1404 = vsel %vm878, %v1399, -inf
        %1405 = vmax.xlane.f32.xlu0 %v1404
        %v1406 = vpop.xlane.xlu0 %1405
        %v1407 = vsub.f32 %v1399, %v1406
        %v1408 = vmul.f32 %v1407, 1.442695
        %v1409 = vpow.pop %v1408
        %v1410 = vsel %vm878, %v1409, 0.0
        %1411 = vadd.xlane.f32.xlu0 %v1410
        %v1412 = vpop.xlane.xlu0 %1411
        %v1413 = vrcp.pop %v1412
        %v1414 = vmul.f32 %v1409, %v1413
        %s1415 = scalar_lea.vmem %s669, 24 [#allocation15]
        %1416 = vst.msk [vmem:[%s1415] sm:$0xff] %vm878, %v1414
        %v1417 = vpack.c.bf16 %v1414, %v1414
        %1418 = vrot.lane.b32.xlu0 %v877, 104
        %v1419 = vpop.permute.xlu0 %1418
        %v1421 = vsel %vm878, %v1417, 0
        %v1424 = vsel %vm941, %v1419, 0
        %1426 = vmatprep.subr.bf16.mxu0 0
        %1427 = vmatpush1.bf16.msra.mxu0 0
        %1428 = vmatprep.subr.bf16.mxu0 0
        %1429 = vmatpush1.bf16.msra.mxu0 0
        %1430 = vmatprep.subr.bf16.mxu0 0
        %1431 = vmatpush1.bf16.msra.mxu0 0
        %1432 = vmatprep.subr.bf16.mxu0 0
        %1433 = vmatpush1.bf16.msra.mxu0 0
        %1434 = vmatprep.subr.bf16.mxu0 0
        %1435 = vmatpush1.bf16.msra.mxu0 0
        %1436 = vmatprep.subr.bf16.mxu0 0
        %1437 = vmatpush1.bf16.msra.mxu0 0
        %1438 = vmatprep.subr.bf16.mxu0 0
        %1439 = vmatpush1.bf16.msra.mxu0 0
        %1440 = vmatprep.subr.bf16.mxu0 0
        %1441 = vmatpush1.bf16.msra.mxu0 %v1424
        %1442 = vmatprep.subr.bf16.mxu0 0
        %1443 = vmatpush2.bf16.msra.mxu0 0
        %1444 = vmatprep.subr.bf16.mxu0 0
        %1445 = vmatpush2.bf16.msra.mxu0 0
        %1446 = vmatprep.subr.bf16.mxu0 0
        %1447 = vmatpush2.bf16.msra.mxu0 0
        %1448 = vmatprep.subr.bf16.mxu0 0
        %1449 = vmatpush2.bf16.msra.mxu0 0
        %1450 = vmatprep.subr.bf16.mxu0 0
        %1451 = vmatpush2.bf16.msra.mxu0 0
        %1452 = vmatprep.subr.bf16.mxu0 0
        %1453 = vmatpush2.bf16.msra.mxu0 0
        %1454 = vmatprep.subr.bf16.mxu0 0
        %1455 = vmatpush2.bf16.msra.mxu0 0
        %1456 = vmatprep.subr.bf16.mxu0 0
        %1457 = vmatpush2.bf16.msra.mxu0 0
        %1458 = vmatprep.mubr.bf16.mxu0 0
        %1459 = vmatmul.mubr.bf16.gmra.mxu0 %v1421
        %v1460 = vpop.f32.mrf.mxu0
        %v1461 = vadd.f32 0.0, %v1460
        %v1462 = vpop.f32.mrf.mxu0
        %v1463 = vpop.f32.mrf.mxu0
        %v1464 = vpop.f32.mrf.mxu0
        %1465 = vdwg.mxu0
        %v1466 = vpack.c.bf16 %v1461, %v1461
        %v1468 = vsel %vm878, %v1466, 0
        %v1471 = vsel %vm941, %v874, 0
        %1473 = vmatprep.subr.bf16.mxu0 0
        %1474 = vmatpush1.bf16.msra.mxu0 0
        %1475 = vmatprep.subr.bf16.mxu0 0
        %1476 = vmatpush1.bf16.msra.mxu0 0
        %1477 = vmatprep.subr.bf16.mxu0 0
        %1478 = vmatpush1.bf16.msra.mxu0 0
        %1479 = vmatprep.subr.bf16.mxu0 0
        %1480 = vmatpush1.bf16.msra.mxu0 0
        %1481 = vmatprep.subr.bf16.mxu0 0
        %1482 = vmatpush1.bf16.msra.mxu0 0
        %1483 = vmatprep.subr.bf16.mxu0 0
        %1484 = vmatpush1.bf16.msra.mxu0 0
        %1485 = vmatprep.subr.bf16.mxu0 0
        %1486 = vmatpush1.bf16.msra.mxu0 0
        %1487 = vmatprep.subr.bf16.mxu0 0
        %1488 = vmatpush1.bf16.msra.mxu0 %v1471
        %1489 = vmatprep.subr.bf16.mxu0 0
        %1490 = vmatpush2.bf16.msra.mxu0 0
        %1491 = vmatprep.subr.bf16.mxu0 0
        %1492 = vmatpush2.bf16.msra.mxu0 0
        %1493 = vmatprep.subr.bf16.mxu0 0
        %1494 = vmatpush2.bf16.msra.mxu0 0
        %1495 = vmatprep.subr.bf16.mxu0 0
        %1496 = vmatpush2.bf16.msra.mxu0 0
        %1497 = vmatprep.subr.bf16.mxu0 0
        %1498 = vmatpush2.bf16.msra.mxu0 0
        %1499 = vmatprep.subr.bf16.mxu0 0
        %1500 = vmatpush2.bf16.msra.mxu0 0
        %1501 = vmatprep.subr.bf16.mxu0 0
        %1502 = vmatpush2.bf16.msra.mxu0 0
        %1503 = vmatprep.subr.bf16.mxu0 0
        %1504 = vmatpush2.bf16.msra.mxu0 0
        %1505 = vmatprep.mubr.bf16.mxu0 0
        %1506 = vmatmul.mubr.bf16.gmra.mxu0 %v1468
        %v1507 = vpop.f32.mrf.mxu0
        %v1508 = vadd.f32 0.0, %v1507
        %v1509 = vpop.f32.mrf.mxu0
        %v1510 = vpop.f32.mrf.mxu0
        %v1511 = vpop.f32.mrf.mxu0
        %1512 = vdwg.mxu0
        %v1513 = vadd.f32 %v1353, %v1508
        %v1514 = vld [vmem:[#allocation11] sm:$0x1]
        %v1516 = vlaneseq
        %v1517 = vshrl.u32 %v1516, 7
        %v1518 = vsub.s32 0, %v1517
        %v1519 = vrot.slane %v1514, %v1518
        %v1521 = vadd.f32 %v1513, %v1519
        %v1522 = vadd.f32 %v1521, %v675
        %v1523 = vsel %vm700, %v1522, 0.0
        %1524 = vadd.xlane.f32.xlu0 %v1523
        %v1525 = vpop.xlane.xlu0 %1524
        %v1526 = vrcp.pop 32.0
        %v1527 = vmul.f32 %v1525, %v1526
        %v1528 = vsub.f32 %v1522, %v1527
        %v1529 = vmul.f32 %v1528, %v1528
        %v1530 = vsel %vm700, %v1529, 0.0
        %1531 = vadd.xlane.f32.xlu0 %v1530
        %v1532 = vpop.xlane.xlu0 %1531
        %v1533 = vmul.f32 %v1532, %v1526
        %v1534 = vadd.f32 %v1533, 1e-05
        %v1535 = vrsqrt.pop %v1534
        %v1536 = vmul.f32 %v1528, %v1535
        %v1537 = vld [vmem:[#allocation13] sm:$0x1]
        %v1539 = vlaneseq
        %v1540 = vshrl.u32 %v1539, 7
        %v1541 = vsub.s32 0, %v1540
        %v1542 = vrot.slane %v1537, %v1541
        %v1544 = vmul.f32 %v1536, %v1542
        %v1545 = vld [vmem:[%s10] sm:$0x1]
        %v1547 = vlaneseq
        %v1548 = vshrl.u32 %v1547, 7
        %v1549 = vsub.s32 0, %v1548
        %v1550 = vrot.slane %v1545, %v1549
        %v1552 = vadd.f32 %v1544, %v1550
        %v1553 = vpack.c.bf16 %v1552, %v1552
        %v1554 = vld [vmem:[%s11] sm:$0xf]
        %v1555 = vld [vmem:[%s11 + $0x4] sm:$0xf]
        %v1556 = vld [vmem:[%s11 + $0x8] sm:$0xf]
        %v1557 = vld [vmem:[%s11 + $0xc] sm:$0xf]
        %v1558 = vld [vmem:[%s12] sm:$0x1]
        %v1560 = vlaneseq
        %v1561 = vshrl.u32 %v1560, 7
        %v1562 = vsub.s32 0, %v1561
        %v1563 = vrot.slane %v1558, %v1562
        %v1569 = vunpack.c.l.b16 %v1554
        %v1570 = vunpack.c.l.b16 %v1555
        %v1571 = vunpack.c.l.b16 %v1556
        %v1572 = vunpack.c.l.b16 %v1557
        %v1573 = vpack.c.b16 %v1570, %v1569
        %v1574 = vpack.c.b16 %v1572, %v1571
        %v1578 = vsel %vm700, %v1553, 0
        %1580 = vmatprep.subr.bf16.mxu0 0
        %1581 = vmatpush1.bf16.msra.mxu0 0
        %1582 = vmatprep.subr.bf16.mxu0 0
        %1583 = vmatpush1.bf16.msra.mxu0 0
        %1584 = vmatprep.subr.bf16.mxu0 0
        %1585 = vmatpush1.bf16.msra.mxu0 0
        %1586 = vmatprep.subr.bf16.mxu0 0
        %1587 = vmatpush1.bf16.msra.mxu0 0
        %1588 = vmatprep.subr.bf16.mxu0 0
        %1589 = vmatpush1.bf16.msra.mxu0 0
        %1590 = vmatprep.subr.bf16.mxu0 0
        %1591 = vmatpush1.bf16.msra.mxu0 0
        %1592 = vmatprep.subr.bf16.mxu0 0
        %1593 = vmatpush1.bf16.msra.mxu0 %v1574
        %1594 = vmatprep.subr.bf16.mxu0 0
        %1595 = vmatpush1.bf16.msra.mxu0 %v1573
        %1596 = vmatprep.subr.bf16.mxu0 0
        %1597 = vmatpush2.bf16.msra.mxu0 0
        %1598 = vmatprep.subr.bf16.mxu0 0
        %1599 = vmatpush2.bf16.msra.mxu0 0
        %1600 = vmatprep.subr.bf16.mxu0 0
        %1601 = vmatpush2.bf16.msra.mxu0 0
        %1602 = vmatprep.subr.bf16.mxu0 0
        %1603 = vmatpush2.bf16.msra.mxu0 0
        %1604 = vmatprep.subr.bf16.mxu0 0
        %1605 = vmatpush2.bf16.msra.mxu0 0
        %1606 = vmatprep.subr.bf16.mxu0 0
        %1607 = vmatpush2.bf16.msra.mxu0 0
        %1608 = vmatprep.subr.bf16.mxu0 0
        %1609 = vmatpush2.bf16.msra.mxu0 0
        %1610 = vmatprep.subr.bf16.mxu0 0
        %1611 = vmatpush2.bf16.msra.mxu0 0
        %1612 = vmatprep.mubr.bf16.mxu0 0
        %1613 = vmatmul.mubr.bf16.gmra.mxu0 %v1578
        %v1614 = vpop.f32.mrf.mxu0
        %v1615 = vadd.f32 %v1563, %v1614
        %v1616 = vpop.f32.mrf.mxu0
        %v1617 = vpop.f32.mrf.mxu0
        %v1618 = vpop.f32.mrf.mxu0
        %1619 = vdwg.mxu0
        %v1620 = vmax.f32 %v1615, 0.0
        %v1621 = vpack.c.bf16 %v1620, %v1620
        %v1622 = vld [vmem:[%s13] sm:$0xf]
        %v1623 = vld [vmem:[%s13 + $0x4] sm:$0xf]
        %v1624 = vld [vmem:[%s13 + $0x8] sm:$0xf]
        %v1625 = vld [vmem:[%s13 + $0xc] sm:$0xf]
        %v1626 = vld [vmem:[%s13 + $0x10] sm:$0xf]
        %v1627 = vld [vmem:[%s13 + $0x14] sm:$0xf]
        %v1628 = vld [vmem:[%s13 + $0x18] sm:$0xf]
        %v1629 = vld [vmem:[%s13 + $0x1c] sm:$0xf]
        %v1630 = vld [vmem:[%s14] sm:$0x1]
        %v1632 = vlaneseq
        %v1633 = vshrl.u32 %v1632, 7
        %v1634 = vsub.s32 0, %v1633
        %v1635 = vrot.slane %v1630, %v1634
        %v1645 = vunpack.c.l.b16 %v1622
        %v1646 = vunpack.c.l.b16 %v1623
        %v1647 = vunpack.c.l.b16 %v1624
        %v1648 = vunpack.c.l.b16 %v1625
        %v1649 = vunpack.c.l.b16 %v1626
        %v1650 = vunpack.c.l.b16 %v1627
        %v1651 = vunpack.c.l.b16 %v1628
        %v1652 = vunpack.c.l.b16 %v1629
        %v1653 = vpack.c.b16 %v1646, %v1645
        %v1654 = vpack.c.b16 %v1648, %v1647
        %v1655 = vpack.c.b16 %v1650, %v1649
        %v1656 = vpack.c.b16 %v1652, %v1651
        %vm1661 = vcmask 523264
        %v1663 = vsel %vm1661, %v1621, 0
        %1665 = vmatprep.subr.bf16.mxu0 0
        %1666 = vmatpush1.bf16.msra.mxu0 0
        %1667 = vmatprep.subr.bf16.mxu0 0
        %1668 = vmatpush1.bf16.msra.mxu0 0
        %1669 = vmatprep.subr.bf16.mxu0 0
        %1670 = vmatpush1.bf16.msra.mxu0 0
        %1671 = vmatprep.subr.bf16.mxu0 0
        %1672 = vmatpush1.bf16.msra.mxu0 0
        %1673 = vmatprep.subr.bf16.mxu0 0
        %1674 = vmatpush1.bf16.msra.mxu0 %v1656
        %1675 = vmatprep.subr.bf16.mxu0 0
        %1676 = vmatpush1.bf16.msra.mxu0 %v1655
        %1677 = vmatprep.subr.bf16.mxu0 0
        %1678 = vmatpush1.bf16.msra.mxu0 %v1654
        %1679 = vmatprep.subr.bf16.mxu0 0
        %1680 = vmatpush1.bf16.msra.mxu0 %v1653
        %1681 = vmatprep.subr.bf16.mxu0 0
        %1682 = vmatpush2.bf16.msra.mxu0 0
        %1683 = vmatprep.subr.bf16.mxu0 0
        %1684 = vmatpush2.bf16.msra.mxu0 0
        %1685 = vmatprep.subr.bf16.mxu0 0
        %1686 = vmatpush2.bf16.msra.mxu0 0
        %1687 = vmatprep.subr.bf16.mxu0 0
        %1688 = vmatpush2.bf16.msra.mxu0 0
        %1689 = vmatprep.subr.bf16.mxu0 0
        %1690 = vmatpush2.bf16.msra.mxu0 0
        %1691 = vmatprep.subr.bf16.mxu0 0
        %1692 = vmatpush2.bf16.msra.mxu0 0
        %1693 = vmatprep.subr.bf16.mxu0 0
        %1694 = vmatpush2.bf16.msra.mxu0 0
        %1695 = vmatprep.subr.bf16.mxu0 0
        %1696 = vmatpush2.bf16.msra.mxu0 0
        %1697 = vmatprep.mubr.bf16.mxu0 0
        %1698 = vmatmul.mubr.bf16.gmra.mxu0 %v1663
        %v1699 = vpop.f32.mrf.mxu0
        %v1700 = vadd.f32 %v1635, %v1699
        %v1701 = vpop.f32.mrf.mxu0
        %v1702 = vpop.f32.mrf.mxu0
        %v1703 = vpop.f32.mrf.mxu0
        %1704 = vdwg.mxu0
        %v1705 = vadd.f32 %v1700, %v1552
        %v1706 = vsel %vm700, %v1705, 0.0
        %1707 = vadd.xlane.f32.xlu0 %v1706
        %v1708 = vpop.xlane.xlu0 %1707
        %v1709 = vmul.f32 %v1708, %v1526
        %v1710 = vsub.f32 %v1705, %v1709
        %v1711 = vmul.f32 %v1710, %v1710
        %v1712 = vsel %vm700, %v1711, 0.0
        %1713 = vadd.xlane.f32.xlu0 %v1712
        %v1714 = vpop.xlane.xlu0 %1713
        %v1715 = vmul.f32 %v1714, %v1526
        %v1716 = vadd.f32 %v1715, 1e-05
        %v1717 = vrsqrt.pop %v1716
        %v1718 = vmul.f32 %v1710, %v1717
        %v1719 = vld [vmem:[%s15] sm:$0x1]
        %v1721 = vlaneseq
        %v1722 = vshrl.u32 %v1721, 7
        %v1723 = vsub.s32 0, %v1722
        %v1724 = vrot.slane %v1719, %v1723
        %v1726 = vmul.f32 %v1718, %v1724
        %v1727 = vld [vmem:[%s16] sm:$0x1]
        %v1729 = vlaneseq
        %v1730 = vshrl.u32 %v1729, 7
        %v1731 = vsub.s32 0, %v1730
        %v1732 = vrot.slane %v1727, %v1731
        %v1734 = vadd.f32 %v1726, %v1732
        %1735 = vst.msk [vmem:[%s662] sm:$0xff] %vm700, %v1734
        %s1736 = sand.u32 %s410, 1
        %s1737 = scalar_lea.sflag [#allocation4], %s1736
        %s1738 = sand.u32 %s410, 1
        %s1739 = smul.addr %s1738, 8
        %s1740 = scalar_lea.vmem [#allocation14], %s1739
        %s1741 = sand.u32 %s436, 1
        %s1742 = scalar_lea.sflag [#allocation16], %s1741
        %s1743 = sand.u32 %s436, 1
        %s1744 = smul.addr %s1743, 32
        %s1745 = scalar_lea.vmem [#allocation15], %s1744
        // Predicated region
        $region117: #{tpu_custom_call.1} parent=87 // pred_check
          %p1746 = pneg %p420
        $region118: #{tpu_custom_call.1} parent=87 // pred_check_branch
          %1748 = sbr.rel (%p1746) target = $region120
        $region119: #{tpu_custom_call.1} parent=87 // pred_region
          %s1750 = ssub.s32 128, 128
          %1751 = vsyncadd %s1737, %s1750
          %s1752 = smul.addr %s40, 128
          %s1753 = scalar_lea.hbm %s17, %s1752
          %s1755 = sshll.u32 %s1740, 4
          %s1756 = int_to_ptr.vmem [resolvable:$true] %s1755
          %1758 = dma.vmem_to_hbm [thread:$0]  %s1756, 128, %s1753, %s1737
        $region120: #{tpu_custom_call.1} parent=87 // pred_fallthru
          _
        // Predicated region
        $region121: #{tpu_custom_call.1} parent=87 // pred_check
          %p1759 = pneg %p446
        $region122: #{tpu_custom_call.1} parent=87 // pred_check_branch
          %1761 = sbr.rel (%p1759) target = $region124
        $region123: #{tpu_custom_call.1} parent=87 // pred_region
          %s1763 = ssub.s32 512, 512
          %1764 = vsyncadd %s1742, %s1763
          %s1765 = smul.addr %s40, 4
          %s1766 = smul.addr %s1765, 128
          %s1767 = scalar_lea.hbm %s18, %s1766
          %s1768 = sshll.u32 %s1745, 4
          %s1769 = int_to_ptr.vmem [resolvable:$true] %s1768
          %1774 = dma.vmem_to_hbm [thread:$0]  %s1769, 512, %s1767, %s1742, 128, 128, 8
        $region124: #{tpu_custom_call.1} parent=87 // pred_fallthru
          _
      $region88: #{tpu_custom_call.1} parent=5 // pred_fallthru
        _
      %p1775 = scmp.le.s32.totalorder 2, %s35
      // Predicated region
      $region125: #{tpu_custom_call.1} parent=5 // pred_check
        %p1776 = pneg %p1775
      $region126: #{tpu_custom_call.1} parent=5 // pred_check_branch
        %1778 = sbr.rel (%p1776) target = $region128
      $region127: #{tpu_custom_call.1} parent=5 // pred_region
        %s1779 = ssub.s32 %s35, 2
        // Predicated region
        $region129: #{tpu_custom_call.1} parent=127 // pred_check
          %p1780 = pneg %p426
        $region130: #{tpu_custom_call.1} parent=127 // pred_check_branch
          %1782 = sbr.rel (%p1780) target = $region132
        $region131: #{tpu_custom_call.1} parent=127 // pred_region
          %s1783 = sand.u32 %s411, 1
          %s1784 = scalar_lea.sflag [#allocation4], %s1783
          %s1785 = sand.u32 %s411, 1
          %s1786 = smul.addr %s1785, 8
          %s1787 = scalar_lea.vmem [#allocation14], %s1786
          %1788 = dma.done %s1784, 128
        $region132: #{tpu_custom_call.1} parent=127 // pred_fallthru
          _
        // Predicated region
        $region133: #{tpu_custom_call.1} parent=127 // pred_check
          %p1789 = pneg %p452
        $region134: #{tpu_custom_call.1} parent=127 // pred_check_branch
          %1791 = sbr.rel (%p1789) target = $region136
        $region135: #{tpu_custom_call.1} parent=127 // pred_region
          %s1792 = sand.u32 %s437, 1
          %s1793 = scalar_lea.sflag [#allocation16], %s1792
          %s1794 = sand.u32 %s437, 1
          %s1795 = smul.addr %s1794, 32
          %s1796 = scalar_lea.vmem [#allocation15], %s1795
          %1797 = dma.done %s1793, 512
        $region136: #{tpu_custom_call.1} parent=127 // pred_fallthru
          _
      $region128: #{tpu_custom_call.1} parent=5 // pred_fallthru
        _
    $region6: #{tpu_custom_call.1} parent=1 // loop_footer
      %s39 = sadd.s32 1, %s35
    $region7: #{tpu_custom_call.1} parent=1 // loop_footer_branch
      %34 = sbr.rel target = $region3
    $region8: #{tpu_custom_call.1} parent=1 // loop_exit
      _
    %1798 = vsyncpa [#allocation3], 1
    %s1799 = scalar_lea.sflag [#allocation3], 1
    %1800 = vsyncpa %s1799, 1
    %1801 = vsyncpa [#allocation6], 1
    %1802 = vsyncpa [#allocation9], 1
    %1803 = vsyncpa [#allocation12], 1
    %1804 = vsyncpa [#allocation4], 1
    %s1805 = scalar_lea.sflag [#allocation4], 1
    %1806 = vsyncpa %s1805, 1
    %1807 = vsyncpa [#allocation16], 1
    %s1808 = scalar_lea.sflag [#allocation16], 1
    %1809 = vsyncpa %s1808, 1

</llo_original>
